<compile_context>
chip_gen: v6e
topology: v6e:2x2x1
jax: 0.10.0
libtpu: 0.0.40
codegen_flags: <defaults>
</compile_context>

<pallas_src>
import functools

import jax
import jax.numpy as jnp
from jax import lax
from jax.experimental import pallas as pl
from jax.experimental.pallas import tpu as pltpu


def _zero_halo(ref, Hh, Wh, C):
    """Zero only the 1-pixel halo ring of a (Hh+2, Wh+2, C) padded scratch."""
    z_row = jnp.zeros((1, Wh + 2, C), jnp.float32)
    z_col = jnp.zeros((Hh + 2, 1, C), jnp.float32)
    ref[0:1, :, :] = z_row
    ref[Hh + 1:Hh + 2, :, :] = z_row
    ref[:, 0:1, :] = z_col
    ref[:, Wh + 1:Wh + 2, :] = z_col


def _down_fused_kernel(x_ref, w1_ref, b1_ref, w2_ref, b2_ref, o_ref,
                       pad1_ref, pad2_ref, *, Nb, Hh, Wh, Cin, Cmid, Cout):
    # Halo ring is the only part of the scratches not overwritten below; re-zero
    # it per grid step (cheap: 8 small edge stores) so correctness never depends
    # on which TensorCore ran which grid index.
    _zero_halo(pad1_ref, Hh, Wh, Cin)
    _zero_halo(pad2_ref, Hh, Wh, Cmid)

    def conv3x3(pad_ref, w_ref, b_ref, cin):
        # im2col: 9 shifted views of the zero-padded activation, concatenated on
        # the lane axis in (tap, channel) order -> ONE MXU matmul with K=9*cin.
        taps = [pad_ref[dy:dy + Hh, dx:dx + Wh, :]
                for dy in range(3) for dx in range(3)]
        patches = jnp.concatenate(taps, axis=-1)            # (Hh, Wh, 9*cin) f32
        patches = patches.reshape(Hh * Wh, 9 * cin)          # collapse majors
        acc = jnp.dot(patches.astype(jnp.bfloat16), w_ref[...],
                      preferred_element_type=jnp.float32)    # (Hh*Wh, cout) f32
        return jnp.maximum(acc + b_ref[...], 0.0)            # bias + ReLU (f32)

    for b in range(Nb):  # static unroll over the images of this grid step
        # ------------------------ MaxPool 2x2 (in-kernel) ------------------------
        # x_ref block: (Nb, Hh, 2, Wh, 2*Cin); axis 2 = row parity, the two
        # W-phases of every pooled pixel sit side by side on the lane axis.
        a0 = x_ref[b, :, 0, :, 0:Cin]
        a1 = x_ref[b, :, 0, :, Cin:2 * Cin]
        b0 = x_ref[b, :, 1, :, 0:Cin]
        b1 = x_ref[b, :, 1, :, Cin:2 * Cin]
        pooled = jnp.maximum(jnp.maximum(a0, a1),
                             jnp.maximum(b0, b1)).astype(jnp.float32)

        # conv1: write pooled interior into the zero-haloed scratch, one matmul.
        pad1_ref[1:Hh + 1, 1:Wh + 1, :] = pooled
        y1 = conv3x3(pad1_ref, w1_ref, b1_ref, Cin)           # (Hh*Wh, Cmid) f32

        # conv2: same pattern on the conv1 activation (never leaves VMEM).
        pad2_ref[1:Hh + 1, 1:Wh + 1, :] = y1.reshape(Hh, Wh, Cmid)
        y2 = conv3x3(pad2_ref, w2_ref, b2_ref, Cmid)          # (Hh*Wh, Cout) f32

        o_ref[b, :, :, :] = y2.reshape(Hh, Wh, Cout).astype(o_ref.dtype)


def down_forward(x_nchw, params, eps=1e-5):
    """Fused MaxPool2d(2) -> (Conv3x3 -> BN(eval) -> ReLU) x 2.

    params = [(w_oihw, gamma, beta, running_mean, running_var), ...] x 2
    """
    N, Cin, H, W = x_nchw.shape
    assert H % 2 == 0 and W % 2 == 0, "MaxPool2d(2) path assumes even H, W"
    Hh, Wh = H // 2, W // 2

    # NCHW -> NHWC (channels on lanes); layout glue around the fused kernel.
    x_nhwc = jnp.transpose(x_nchw, (0, 2, 3, 1))
    # Layout-preserving reshape: (N,H,W,C) -> (N,Hh,2,Wh,2C).  Row parity gets its
    # own axis; the two W-phases of each pooled pixel are packed on the lane axis.
    x5 = x_nhwc.reshape(N, Hh, 2, Wh, 2 * Cin)

    def fold_bn(w_oihw, gamma, beta, mean, var):
        scale = gamma / jnp.sqrt(var + eps)                               # (Cout,)
        w = w_oihw.astype(jnp.float32) * scale[:, None, None, None]       # fold BN
        bias = (beta - mean * scale).reshape(1, -1).astype(jnp.float32)
        cout, cin = w.shape[0], w.shape[1]
        # OIHW -> (ky,kx,I,O) -> (9*I, O); K index = (ky*3+kx)*I + i, matching the
        # in-kernel tap-major im2col concat.  bf16 operands for the MXU.
        w_flat = jnp.transpose(w, (2, 3, 1, 0)).reshape(9 * cin, cout)
        return w_flat.astype(jnp.bfloat16), bias

    (w1, g1, b1, m1, v1), (w2, g2, b2, m2, v2) = params
    w1_f, bias1 = fold_bn(w1, g1, b1, m1, v1)
    w2_f, bias2 = fold_bn(w2, g2, b2, m2, v2)
    Cmid, Cout = w1.shape[0], w2.shape[0]

    # Batch blocking: largest divisor of N whose input+output blocks fit a small
    # VMEM budget (amortizes per-grid-step overhead; keeps double-buffering alive).
    per_img_bytes = 4 * (H * W * Cin + Hh * Wh * Cout)
    budget = 8 << 20
    Nb = 1
    for d in range(N, 0, -1):
        if N % d == 0 and d * per_img_bytes <= budget:
            Nb = d
            break

    kernel = functools.partial(_down_fused_kernel, Nb=Nb, Hh=Hh, Wh=Wh,
                               Cin=Cin, Cmid=Cmid, Cout=Cout)

    out_nhwc = pl.pallas_call(
        kernel,
        out_shape=jax.ShapeDtypeStruct((N, Hh, Wh, Cout), x_nchw.dtype),
        grid=(N // Nb,),
        in_specs=[
            pl.BlockSpec((Nb, Hh, 2, Wh, 2 * Cin), lambda n: (n, 0, 0, 0, 0)),
            pl.BlockSpec((9 * Cin, Cmid), lambda n: (0, 0)),
            pl.BlockSpec((1, Cmid), lambda n: (0, 0)),
            pl.BlockSpec((9 * Cmid, Cout), lambda n: (0, 0)),
            pl.BlockSpec((1, Cout), lambda n: (0, 0)),
        ],
        out_specs=pl.BlockSpec((Nb, Hh, Wh, Cout), lambda n: (n, 0, 0, 0)),
        scratch_shapes=[
            pltpu.VMEM((Hh + 2, Wh + 2, Cin), jnp.float32),   # conv1 padded input
            pltpu.VMEM((Hh + 2, Wh + 2, Cmid), jnp.float32),  # conv2 padded input
        ],
        compiler_params=pltpu.CompilerParams(
            dimension_semantics=("parallel",),
            vmem_limit_bytes=32 << 20,
        ),
    )(x5, w1_f, bias1, w2_f, bias2)

    return jnp.transpose(out_nhwc, (0, 3, 1, 2))              # NHWC -> NCHW


# ------------------------------ pure-JAX reference ------------------------------
def _reference(x_nchw, params, eps=1e-5):
    x = lax.reduce_window(x_nchw, -jnp.inf, lax.max,
                          (1, 1, 2, 2), (1, 1, 2, 2), "VALID")
    for (w, gamma, beta, mean, var) in params:
        x = lax.conv_general_dilated(x, w, window_strides=(1, 1),
                                     padding=((1, 1), (1, 1)),
                                     dimension_numbers=("NCHW", "OIHW", "NCHW"),
                                     precision=lax.Precision.HIGHEST)
        scale = (gamma / jnp.sqrt(var + eps))[None, :, None, None]
        bias = (beta - mean * gamma / jnp.sqrt(var + eps))[None, :, None, None]
        x = jnp.maximum(x * scale + bias, 0.0)
    return x


if __name__ == "__main__":
    key = jax.random.PRNGKey(0)
    ks = jax.random.split(key, 12)

    N, in_channels, H, W = 2, 4, 16, 16
    out_channels = 8
    mid_channels = out_channels  # DoubleConv default

    x = jax.random.normal(ks[0], (N, in_channels, H, W), dtype=jnp.float32)

    # Conv1 (in_channels -> mid_channels) + BN1
    w1 = 0.1 * jax.random.normal(ks[1], (mid_channels, in_channels, 3, 3), jnp.float32)
    g1 = 1.0 + 0.1 * jax.random.normal(ks[2], (mid_channels,), jnp.float32)
    b1 = 0.1 * jax.random.normal(ks[3], (mid_channels,), jnp.float32)
    m1 = 0.05 * jax.random.normal(ks[4], (mid_channels,), jnp.float32)
    v1 = 0.5 + jnp.abs(jax.random.normal(ks[5], (mid_channels,), jnp.float32))

    # Conv2 (mid_channels -> out_channels) + BN2
    w2 = 0.1 * jax.random.normal(ks[6], (out_channels, mid_channels, 3, 3), jnp.float32)
    g2 = 1.0 + 0.1 * jax.random.normal(ks[7], (out_channels,), jnp.float32)
    b2 = 0.1 * jax.random.normal(ks[8], (out_channels,), jnp.float32)
    m2 = 0.05 * jax.random.normal(ks[9], (out_channels,), jnp.float32)
    v2 = 0.5 + jnp.abs(jax.random.normal(ks[10], (out_channels,), jnp.float32))

    params = [(w1, g1, b1, m1, v1), (w2, g2, b2, m2, v2)]

    out = down_forward(x, params)
    out = jax.block_until_ready(out)
    assert out.shape == (N, out_channels, H // 2, W // 2)

    ref = _reference(x, params)
    # bf16 MXU operands (f32 accumulation) vs. a Precision.HIGHEST f32 reference:
    # 1e-2 comfortably bounds the quantization error while still catching any
    # pooling / halo / BN-folding bug (those produce O(1e-1..1) errors).
    max_err = float(jnp.max(jnp.abs(out - ref)))
    assert bool(jnp.allclose(out, ref, atol=1e-2, rtol=1e-2)), (
        f"max abs err = {max_err}")

    print("KERNEL_OK")
</pallas_src>

<mosaic_0001>
module attributes {stable_mosaic.version = 11 : i64} {
  func.func @_down_fused_kernel(%arg0: i32, %arg1: memref<2x8x2x8x8xf32, #tpu.memory_space<vmem>>, %arg2: memref<36x8xbf16, #tpu.memory_space<vmem>>, %arg3: memref<1x8xf32, #tpu.memory_space<vmem>>, %arg4: memref<72x8xbf16, #tpu.memory_space<vmem>>, %arg5: memref<1x8xf32, #tpu.memory_space<vmem>>, %arg6: memref<2x8x8x8xf32, #tpu.memory_space<vmem>>, %arg7: memref<10x10x4xf32, #tpu.memory_space<vmem>>, %arg8: memref<10x10x8xf32, #tpu.memory_space<vmem>>) attributes {dimension_semantics = [#tpu.dimension_semantics<parallel>], iteration_bounds = array<i64: 1>, scalar_prefetch = 0 : i64, scratch_operands = 2 : i64, tpu.core_type = #tpu.core_type<tc>, window_params = [{transform_indices = @transform_0, window_bounds = array<i64: 2, 8, 2, 8, 8>}, {pipeline_mode = #tpu.pipeline_mode<synchronous>, transform_indices = @transform_1, window_bounds = array<i64: 36, 8>}, {pipeline_mode = #tpu.pipeline_mode<synchronous>, transform_indices = @transform_2, window_bounds = array<i64: 1, 8>}, {pipeline_mode = #tpu.pipeline_mode<synchronous>, transform_indices = @transform_3, window_bounds = array<i64: 72, 8>}, {pipeline_mode = #tpu.pipeline_mode<synchronous>, transform_indices = @transform_4, window_bounds = array<i64: 1, 8>}, {transform_indices = @transform_5, window_bounds = array<i64: 2, 8, 8, 8>}]} {
    %cst = arith.constant 0.000000e+00 : f32
    %0 = vector.broadcast %cst : f32 to vector<1x10x4xf32>
    %cst_0 = arith.constant 0.000000e+00 : f32
    %1 = vector.broadcast %cst_0 : f32 to vector<10x1x4xf32>
    %c0 = arith.constant 0 : index
    %c0_1 = arith.constant 0 : index
    %c0_2 = arith.constant 0 : index
    %2 = vector.load %arg7[%c0, %c0_1, %c0_2] : memref<10x10x4xf32, #tpu.memory_space<vmem>>, vector<1x10x4xf32>
    tpu.vector_store %arg7[%c0, %c0_1, %c0_2], %0 {strides = array<i32>} : memref<10x10x4xf32, #tpu.memory_space<vmem>>, vector<1x10x4xf32>,
    %c9 = arith.constant 9 : index
    %c0_3 = arith.constant 0 : index
    %c0_4 = arith.constant 0 : index
    %3 = vector.load %arg7[%c9, %c0_3, %c0_4] : memref<10x10x4xf32, #tpu.memory_space<vmem>>, vector<1x10x4xf32>
    tpu.vector_store %arg7[%c9, %c0_3, %c0_4], %0 {strides = array<i32>} : memref<10x10x4xf32, #tpu.memory_space<vmem>>, vector<1x10x4xf32>,
    %c0_5 = arith.constant 0 : index
    %c0_6 = arith.constant 0 : index
    %c0_7 = arith.constant 0 : index
    %4 = vector.load %arg7[%c0_5, %c0_6, %c0_7] : memref<10x10x4xf32, #tpu.memory_space<vmem>>, vector<10x1x4xf32>
    tpu.vector_store %arg7[%c0_5, %c0_6, %c0_7], %1 {strides = array<i32>} : memref<10x10x4xf32, #tpu.memory_space<vmem>>, vector<10x1x4xf32>,
    %c0_8 = arith.constant 0 : index
    %c9_9 = arith.constant 9 : index
    %c0_10 = arith.constant 0 : index
    %5 = vector.load %arg7[%c0_8, %c9_9, %c0_10] : memref<10x10x4xf32, #tpu.memory_space<vmem>>, vector<10x1x4xf32>
    tpu.vector_store %arg7[%c0_8, %c9_9, %c0_10], %1 {strides = array<i32>} : memref<10x10x4xf32, #tpu.memory_space<vmem>>, vector<10x1x4xf32>,
    %cst_11 = arith.constant 0.000000e+00 : f32
    %6 = vector.broadcast %cst_11 : f32 to vector<1x10x8xf32>
    %cst_12 = arith.constant 0.000000e+00 : f32
    %7 = vector.broadcast %cst_12 : f32 to vector<10x1x8xf32>
    %c0_13 = arith.constant 0 : index
    %c0_14 = arith.constant 0 : index
    %c0_15 = arith.constant 0 : index
    %8 = vector.load %arg8[%c0_13, %c0_14, %c0_15] : memref<10x10x8xf32, #tpu.memory_space<vmem>>, vector<1x10x8xf32>
    tpu.vector_store %arg8[%c0_13, %c0_14, %c0_15], %6 {strides = array<i32>} : memref<10x10x8xf32, #tpu.memory_space<vmem>>, vector<1x10x8xf32>,
    %c9_16 = arith.constant 9 : index
    %c0_17 = arith.constant 0 : index
    %c0_18 = arith.constant 0 : index
    %9 = vector.load %arg8[%c9_16, %c0_17, %c0_18] : memref<10x10x8xf32, #tpu.memory_space<vmem>>, vector<1x10x8xf32>
    tpu.vector_store %arg8[%c9_16, %c0_17, %c0_18], %6 {strides = array<i32>} : memref<10x10x8xf32, #tpu.memory_space<vmem>>, vector<1x10x8xf32>,
    %c0_19 = arith.constant 0 : index
    %c0_20 = arith.constant 0 : index
    %c0_21 = arith.constant 0 : index
    %10 = vector.load %arg8[%c0_19, %c0_20, %c0_21] : memref<10x10x8xf32, #tpu.memory_space<vmem>>, vector<10x1x8xf32>
    tpu.vector_store %arg8[%c0_19, %c0_20, %c0_21], %7 {strides = array<i32>} : memref<10x10x8xf32, #tpu.memory_space<vmem>>, vector<10x1x8xf32>,
    %c0_22 = arith.constant 0 : index
    %c9_23 = arith.constant 9 : index
    %c0_24 = arith.constant 0 : index
    %11 = vector.load %arg8[%c0_22, %c9_23, %c0_24] : memref<10x10x8xf32, #tpu.memory_space<vmem>>, vector<10x1x8xf32>
    tpu.vector_store %arg8[%c0_22, %c9_23, %c0_24], %7 {strides = array<i32>} : memref<10x10x8xf32, #tpu.memory_space<vmem>>, vector<10x1x8xf32>,
    %c0_25 = arith.constant 0 : index
    %c0_26 = arith.constant 0 : index
    %c0_27 = arith.constant 0 : index
    %c0_28 = arith.constant 0 : index
    %c0_29 = arith.constant 0 : index
    %12 = vector.load %arg1[%c0_25, %c0_26, %c0_27, %c0_28, %c0_29] : memref<2x8x2x8x8xf32, #tpu.memory_space<vmem>>, vector<1x8x1x8x4xf32>
    %13 = vector.shape_cast %12 : vector<1x8x1x8x4xf32> to vector<8x8x4xf32>
    %c0_30 = arith.constant 0 : index
    %c0_31 = arith.constant 0 : index
    %c0_32 = arith.constant 0 : index
    %c0_33 = arith.constant 0 : index
    %c4 = arith.constant 4 : index
    %14 = vector.load %arg1[%c0_30, %c0_31, %c0_32, %c0_33, %c4] : memref<2x8x2x8x8xf32, #tpu.memory_space<vmem>>, vector<1x8x1x8x4xf32>
    %15 = vector.shape_cast %14 : vector<1x8x1x8x4xf32> to vector<8x8x4xf32>
    %c0_34 = arith.constant 0 : index
    %c0_35 = arith.constant 0 : index
    %c1 = arith.constant 1 : index
    %c0_36 = arith.constant 0 : index
    %c0_37 = arith.constant 0 : index
    %16 = vector.load %arg1[%c0_34, %c0_35, %c1, %c0_36, %c0_37] : memref<2x8x2x8x8xf32, #tpu.memory_space<vmem>>, vector<1x8x1x8x4xf32>
    %17 = vector.shape_cast %16 : vector<1x8x1x8x4xf32> to vector<8x8x4xf32>
    %c0_38 = arith.constant 0 : index
    %c0_39 = arith.constant 0 : index
    %c1_40 = arith.constant 1 : index
    %c0_41 = arith.constant 0 : index
    %c4_42 = arith.constant 4 : index
    %18 = vector.load %arg1[%c0_38, %c0_39, %c1_40, %c0_41, %c4_42] : memref<2x8x2x8x8xf32, #tpu.memory_space<vmem>>, vector<1x8x1x8x4xf32>
    %19 = vector.shape_cast %18 : vector<1x8x1x8x4xf32> to vector<8x8x4xf32>
    %20 = arith.maximumf %13, %15 : vector<8x8x4xf32>
    %21 = arith.maximumf %17, %19 : vector<8x8x4xf32>
    %22 = arith.maximumf %20, %21 : vector<8x8x4xf32>
    %c1_43 = arith.constant 1 : index
    %c1_44 = arith.constant 1 : index
    %c0_45 = arith.constant 0 : index
    %23 = vector.load %arg7[%c1_43, %c1_44, %c0_45] : memref<10x10x4xf32, #tpu.memory_space<vmem>>, vector<8x8x4xf32>
    tpu.vector_store %arg7[%c1_43, %c1_44, %c0_45], %22 {strides = array<i32>} : memref<10x10x4xf32, #tpu.memory_space<vmem>>, vector<8x8x4xf32>,
    %c0_46 = arith.constant 0 : index
    %c0_47 = arith.constant 0 : index
    %c0_48 = arith.constant 0 : index
    %24 = vector.load %arg7[%c0_46, %c0_47, %c0_48] : memref<10x10x4xf32, #tpu.memory_space<vmem>>, vector<8x8x4xf32>
    %c0_49 = arith.constant 0 : index
    %c1_50 = arith.constant 1 : index
    %c0_51 = arith.constant 0 : index
    %25 = vector.load %arg7[%c0_49, %c1_50, %c0_51] : memref<10x10x4xf32, #tpu.memory_space<vmem>>, vector<8x8x4xf32>
    %c0_52 = arith.constant 0 : index
    %c2 = arith.constant 2 : index
    %c0_53 = arith.constant 0 : index
    %26 = vector.load %arg7[%c0_52, %c2, %c0_53] : memref<10x10x4xf32, #tpu.memory_space<vmem>>, vector<8x8x4xf32>
    %c1_54 = arith.constant 1 : index
    %c0_55 = arith.constant 0 : index
    %c0_56 = arith.constant 0 : index
    %27 = vector.load %arg7[%c1_54, %c0_55, %c0_56] : memref<10x10x4xf32, #tpu.memory_space<vmem>>, vector<8x8x4xf32>
    %c1_57 = arith.constant 1 : index
    %c1_58 = arith.constant 1 : index
    %c0_59 = arith.constant 0 : index
    %28 = vector.load %arg7[%c1_57, %c1_58, %c0_59] : memref<10x10x4xf32, #tpu.memory_space<vmem>>, vector<8x8x4xf32>
    %c1_60 = arith.constant 1 : index
    %c2_61 = arith.constant 2 : index
    %c0_62 = arith.constant 0 : index
    %29 = vector.load %arg7[%c1_60, %c2_61, %c0_62] : memref<10x10x4xf32, #tpu.memory_space<vmem>>, vector<8x8x4xf32>
    %c2_63 = arith.constant 2 : index
    %c0_64 = arith.constant 0 : index
    %c0_65 = arith.constant 0 : index
    %30 = vector.load %arg7[%c2_63, %c0_64, %c0_65] : memref<10x10x4xf32, #tpu.memory_space<vmem>>, vector<8x8x4xf32>
    %c2_66 = arith.constant 2 : index
    %c1_67 = arith.constant 1 : index
    %c0_68 = arith.constant 0 : index
    %31 = vector.load %arg7[%c2_66, %c1_67, %c0_68] : memref<10x10x4xf32, #tpu.memory_space<vmem>>, vector<8x8x4xf32>
    %c2_69 = arith.constant 2 : index
    %c2_70 = arith.constant 2 : index
    %c0_71 = arith.constant 0 : index
    %32 = vector.load %arg7[%c2_69, %c2_70, %c0_71] : memref<10x10x4xf32, #tpu.memory_space<vmem>>, vector<8x8x4xf32>
    %33 = tpu.concatenate %24, %25, %26, %27, %28, %29, %30, %31, %32 in 2 : vector<8x8x4xf32>, vector<8x8x4xf32>, vector<8x8x4xf32>, vector<8x8x4xf32>, vector<8x8x4xf32>, vector<8x8x4xf32>, vector<8x8x4xf32>, vector<8x8x4xf32>, vector<8x8x4xf32> -> vector<8x8x36xf32>
    %34 = vector.shape_cast %33 : vector<8x8x36xf32> to vector<64x36xf32>
    %35 = arith.truncf %34 : vector<64x36xf32> to vector<64x36xbf16>
    %c0_72 = arith.constant 0 : index
    %c0_73 = arith.constant 0 : index
    %36 = vector.load %arg2[%c0_72, %c0_73] : memref<36x8xbf16, #tpu.memory_space<vmem>>, vector<36x8xbf16>
    %cst_74 = arith.constant dense<0.000000e+00> : vector<64x8xf32>
    %37 = tpu.matmul %35, %36, %cst_74 {dimension_numbers = #tpu.dot_dimension_numbers<[1], [0], [0], [1], [0, 0, 1, 1], [], []>} : vector<64x36xbf16>, vector<36x8xbf16>, vector<64x8xf32> -> vector<64x8xf32>
    %c0_75 = arith.constant 0 : index
    %c0_76 = arith.constant 0 : index
    %38 = vector.load %arg3[%c0_75, %c0_76] : memref<1x8xf32, #tpu.memory_space<vmem>>, vector<1x8xf32>
    %39 = vector.broadcast %38 : vector<1x8xf32> to vector<64x8xf32>
    %40 = arith.addf %37, %39 : vector<64x8xf32>
    %cst_77 = arith.constant 0.000000e+00 : f32
    %41 = vector.broadcast %cst_77 : f32 to vector<64x8xf32>
    %42 = arith.maximumf %40, %41 : vector<64x8xf32>
    %43 = vector.shape_cast %42 : vector<64x8xf32> to vector<8x8x8xf32>
    %c1_78 = arith.constant 1 : index
    %c1_79 = arith.constant 1 : index
    %c0_80 = arith.constant 0 : index
    %44 = vector.load %arg8[%c1_78, %c1_79, %c0_80] : memref<10x10x8xf32, #tpu.memory_space<vmem>>, vector<8x8x8xf32>
    tpu.vector_store %arg8[%c1_78, %c1_79, %c0_80], %43 {strides = array<i32>} : memref<10x10x8xf32, #tpu.memory_space<vmem>>, vector<8x8x8xf32>,
    %c0_81 = arith.constant 0 : index
    %c0_82 = arith.constant 0 : index
    %c0_83 = arith.constant 0 : index
    %45 = vector.load %arg8[%c0_81, %c0_82, %c0_83] : memref<10x10x8xf32, #tpu.memory_space<vmem>>, vector<8x8x8xf32>
    %c0_84 = arith.constant 0 : index
    %c1_85 = arith.constant 1 : index
    %c0_86 = arith.constant 0 : index
    %46 = vector.load %arg8[%c0_84, %c1_85, %c0_86] : memref<10x10x8xf32, #tpu.memory_space<vmem>>, vector<8x8x8xf32>
    %c0_87 = arith.constant 0 : index
    %c2_88 = arith.constant 2 : index
    %c0_89 = arith.constant 0 : index
    %47 = vector.load %arg8[%c0_87, %c2_88, %c0_89] : memref<10x10x8xf32, #tpu.memory_space<vmem>>, vector<8x8x8xf32>
    %c1_90 = arith.constant 1 : index
    %c0_91 = arith.constant 0 : index
    %c0_92 = arith.constant 0 : index
    %48 = vector.load %arg8[%c1_90, %c0_91, %c0_92] : memref<10x10x8xf32, #tpu.memory_space<vmem>>, vector<8x8x8xf32>
    %c1_93 = arith.constant 1 : index
    %c1_94 = arith.constant 1 : index
    %c0_95 = arith.constant 0 : index
    %49 = vector.load %arg8[%c1_93, %c1_94, %c0_95] : memref<10x10x8xf32, #tpu.memory_space<vmem>>, vector<8x8x8xf32>
    %c1_96 = arith.constant 1 : index
    %c2_97 = arith.constant 2 : index
    %c0_98 = arith.constant 0 : index
    %50 = vector.load %arg8[%c1_96, %c2_97, %c0_98] : memref<10x10x8xf32, #tpu.memory_space<vmem>>, vector<8x8x8xf32>
    %c2_99 = arith.constant 2 : index
    %c0_100 = arith.constant 0 : index
    %c0_101 = arith.constant 0 : index
    %51 = vector.load %arg8[%c2_99, %c0_100, %c0_101] : memref<10x10x8xf32, #tpu.memory_space<vmem>>, vector<8x8x8xf32>
    %c2_102 = arith.constant 2 : index
    %c1_103 = arith.constant 1 : index
    %c0_104 = arith.constant 0 : index
    %52 = vector.load %arg8[%c2_102, %c1_103, %c0_104] : memref<10x10x8xf32, #tpu.memory_space<vmem>>, vector<8x8x8xf32>
    %c2_105 = arith.constant 2 : index
    %c2_106 = arith.constant 2 : index
    %c0_107 = arith.constant 0 : index
    %53 = vector.load %arg8[%c2_105, %c2_106, %c0_107] : memref<10x10x8xf32, #tpu.memory_space<vmem>>, vector<8x8x8xf32>
    %54 = tpu.concatenate %45, %46, %47, %48, %49, %50, %51, %52, %53 in 2 : vector<8x8x8xf32>, vector<8x8x8xf32>, vector<8x8x8xf32>, vector<8x8x8xf32>, vector<8x8x8xf32>, vector<8x8x8xf32>, vector<8x8x8xf32>, vector<8x8x8xf32>, vector<8x8x8xf32> -> vector<8x8x72xf32>
    %55 = vector.shape_cast %54 : vector<8x8x72xf32> to vector<64x72xf32>
    %56 = arith.truncf %55 : vector<64x72xf32> to vector<64x72xbf16>
    %c0_108 = arith.constant 0 : index
    %c0_109 = arith.constant 0 : index
    %57 = vector.load %arg4[%c0_108, %c0_109] : memref<72x8xbf16, #tpu.memory_space<vmem>>, vector<72x8xbf16>
    %cst_110 = arith.constant dense<0.000000e+00> : vector<64x8xf32>
    %58 = tpu.matmul %56, %57, %cst_110 {dimension_numbers = #tpu.dot_dimension_numbers<[1], [0], [0], [1], [0, 0, 1, 1], [], []>} : vector<64x72xbf16>, vector<72x8xbf16>, vector<64x8xf32> -> vector<64x8xf32>
    %c0_111 = arith.constant 0 : index
    %c0_112 = arith.constant 0 : index
    %59 = vector.load %arg5[%c0_111, %c0_112] : memref<1x8xf32, #tpu.memory_space<vmem>>, vector<1x8xf32>
    %60 = vector.broadcast %59 : vector<1x8xf32> to vector<64x8xf32>
    %61 = arith.addf %58, %60 : vector<64x8xf32>
    %cst_113 = arith.constant 0.000000e+00 : f32
    %62 = vector.broadcast %cst_113 : f32 to vector<64x8xf32>
    %63 = arith.maximumf %61, %62 : vector<64x8xf32>
    %64 = vector.shape_cast %63 : vector<64x8xf32> to vector<8x8x8xf32>
    %c0_114 = arith.constant 0 : index
    %c0_115 = arith.constant 0 : index
    %c0_116 = arith.constant 0 : index
    %c0_117 = arith.constant 0 : index
    %65 = vector.load %arg6[%c0_114, %c0_115, %c0_116, %c0_117] : memref<2x8x8x8xf32, #tpu.memory_space<vmem>>, vector<1x8x8x8xf32>
    %66 = vector.shape_cast %65 : vector<1x8x8x8xf32> to vector<8x8x8xf32>
    %67 = vector.shape_cast %64 : vector<8x8x8xf32> to vector<1x8x8x8xf32>
    tpu.vector_store %arg6[%c0_114, %c0_115, %c0_116, %c0_117], %67 {strides = array<i32>} : memref<2x8x8x8xf32, #tpu.memory_space<vmem>>, vector<1x8x8x8xf32>,
    %c1_118 = arith.constant 1 : index
    %c0_119 = arith.constant 0 : index
    %c0_120 = arith.constant 0 : index
    %c0_121 = arith.constant 0 : index
    %c0_122 = arith.constant 0 : index
    %68 = vector.load %arg1[%c1_118, %c0_119, %c0_120, %c0_121, %c0_122] : memref<2x8x2x8x8xf32, #tpu.memory_space<vmem>>, vector<1x8x1x8x4xf32>
    %69 = vector.shape_cast %68 : vector<1x8x1x8x4xf32> to vector<8x8x4xf32>
    %c1_123 = arith.constant 1 : index
    %c0_124 = arith.constant 0 : index
    %c0_125 = arith.constant 0 : index
    %c0_126 = arith.constant 0 : index
    %c4_127 = arith.constant 4 : index
    %70 = vector.load %arg1[%c1_123, %c0_124, %c0_125, %c0_126, %c4_127] : memref<2x8x2x8x8xf32, #tpu.memory_space<vmem>>, vector<1x8x1x8x4xf32>
    %71 = vector.shape_cast %70 : vector<1x8x1x8x4xf32> to vector<8x8x4xf32>
    %c1_128 = arith.constant 1 : index
    %c0_129 = arith.constant 0 : index
    %c1_130 = arith.constant 1 : index
    %c0_131 = arith.constant 0 : index
    %c0_132 = arith.constant 0 : index
    %72 = vector.load %arg1[%c1_128, %c0_129, %c1_130, %c0_131, %c0_132] : memref<2x8x2x8x8xf32, #tpu.memory_space<vmem>>, vector<1x8x1x8x4xf32>
    %73 = vector.shape_cast %72 : vector<1x8x1x8x4xf32> to vector<8x8x4xf32>
    %c1_133 = arith.constant 1 : index
    %c0_134 = arith.constant 0 : index
    %c1_135 = arith.constant 1 : index
    %c0_136 = arith.constant 0 : index
    %c4_137 = arith.constant 4 : index
    %74 = vector.load %arg1[%c1_133, %c0_134, %c1_135, %c0_136, %c4_137] : memref<2x8x2x8x8xf32, #tpu.memory_space<vmem>>, vector<1x8x1x8x4xf32>
    %75 = vector.shape_cast %74 : vector<1x8x1x8x4xf32> to vector<8x8x4xf32>
    %76 = arith.maximumf %69, %71 : vector<8x8x4xf32>
    %77 = arith.maximumf %73, %75 : vector<8x8x4xf32>
    %78 = arith.maximumf %76, %77 : vector<8x8x4xf32>
    %c1_138 = arith.constant 1 : index
    %c1_139 = arith.constant 1 : index
    %c0_140 = arith.constant 0 : index
    %79 = vector.load %arg7[%c1_138, %c1_139, %c0_140] : memref<10x10x4xf32, #tpu.memory_space<vmem>>, vector<8x8x4xf32>
    tpu.vector_store %arg7[%c1_138, %c1_139, %c0_140], %78 {strides = array<i32>} : memref<10x10x4xf32, #tpu.memory_space<vmem>>, vector<8x8x4xf32>,
    %c0_141 = arith.constant 0 : index
    %c0_142 = arith.constant 0 : index
    %c0_143 = arith.constant 0 : index
    %80 = vector.load %arg7[%c0_141, %c0_142, %c0_143] : memref<10x10x4xf32, #tpu.memory_space<vmem>>, vector<8x8x4xf32>
    %c0_144 = arith.constant 0 : index
    %c1_145 = arith.constant 1 : index
    %c0_146 = arith.constant 0 : index
    %81 = vector.load %arg7[%c0_144, %c1_145, %c0_146] : memref<10x10x4xf32, #tpu.memory_space<vmem>>, vector<8x8x4xf32>
    %c0_147 = arith.constant 0 : index
    %c2_148 = arith.constant 2 : index
    %c0_149 = arith.constant 0 : index
    %82 = vector.load %arg7[%c0_147, %c2_148, %c0_149] : memref<10x10x4xf32, #tpu.memory_space<vmem>>, vector<8x8x4xf32>
    %c1_150 = arith.constant 1 : index
    %c0_151 = arith.constant 0 : index
    %c0_152 = arith.constant 0 : index
    %83 = vector.load %arg7[%c1_150, %c0_151, %c0_152] : memref<10x10x4xf32, #tpu.memory_space<vmem>>, vector<8x8x4xf32>
    %c1_153 = arith.constant 1 : index
    %c1_154 = arith.constant 1 : index
    %c0_155 = arith.constant 0 : index
    %84 = vector.load %arg7[%c1_153, %c1_154, %c0_155] : memref<10x10x4xf32, #tpu.memory_space<vmem>>, vector<8x8x4xf32>
    %c1_156 = arith.constant 1 : index
    %c2_157 = arith.constant 2 : index
    %c0_158 = arith.constant 0 : index
    %85 = vector.load %arg7[%c1_156, %c2_157, %c0_158] : memref<10x10x4xf32, #tpu.memory_space<vmem>>, vector<8x8x4xf32>
    %c2_159 = arith.constant 2 : index
    %c0_160 = arith.constant 0 : index
    %c0_161 = arith.constant 0 : index
    %86 = vector.load %arg7[%c2_159, %c0_160, %c0_161] : memref<10x10x4xf32, #tpu.memory_space<vmem>>, vector<8x8x4xf32>
    %c2_162 = arith.constant 2 : index
    %c1_163 = arith.constant 1 : index
    %c0_164 = arith.constant 0 : index
    %87 = vector.load %arg7[%c2_162, %c1_163, %c0_164] : memref<10x10x4xf32, #tpu.memory_space<vmem>>, vector<8x8x4xf32>
    %c2_165 = arith.constant 2 : index
    %c2_166 = arith.constant 2 : index
    %c0_167 = arith.constant 0 : index
    %88 = vector.load %arg7[%c2_165, %c2_166, %c0_167] : memref<10x10x4xf32, #tpu.memory_space<vmem>>, vector<8x8x4xf32>
    %89 = tpu.concatenate %80, %81, %82, %83, %84, %85, %86, %87, %88 in 2 : vector<8x8x4xf32>, vector<8x8x4xf32>, vector<8x8x4xf32>, vector<8x8x4xf32>, vector<8x8x4xf32>, vector<8x8x4xf32>, vector<8x8x4xf32>, vector<8x8x4xf32>, vector<8x8x4xf32> -> vector<8x8x36xf32>
    %90 = vector.shape_cast %89 : vector<8x8x36xf32> to vector<64x36xf32>
    %91 = arith.truncf %90 : vector<64x36xf32> to vector<64x36xbf16>
    %c0_168 = arith.constant 0 : index
    %c0_169 = arith.constant 0 : index
    %92 = vector.load %arg2[%c0_168, %c0_169] : memref<36x8xbf16, #tpu.memory_space<vmem>>, vector<36x8xbf16>
    %cst_170 = arith.constant dense<0.000000e+00> : vector<64x8xf32>
    %93 = tpu.matmul %91, %92, %cst_170 {dimension_numbers = #tpu.dot_dimension_numbers<[1], [0], [0], [1], [0, 0, 1, 1], [], []>} : vector<64x36xbf16>, vector<36x8xbf16>, vector<64x8xf32> -> vector<64x8xf32>
    %c0_171 = arith.constant 0 : index
    %c0_172 = arith.constant 0 : index
    %94 = vector.load %arg3[%c0_171, %c0_172] : memref<1x8xf32, #tpu.memory_space<vmem>>, vector<1x8xf32>
    %95 = vector.broadcast %94 : vector<1x8xf32> to vector<64x8xf32>
    %96 = arith.addf %93, %95 : vector<64x8xf32>
    %cst_173 = arith.constant 0.000000e+00 : f32
    %97 = vector.broadcast %cst_173 : f32 to vector<64x8xf32>
    %98 = arith.maximumf %96, %97 : vector<64x8xf32>
    %99 = vector.shape_cast %98 : vector<64x8xf32> to vector<8x8x8xf32>
    %c1_174 = arith.constant 1 : index
    %c1_175 = arith.constant 1 : index
    %c0_176 = arith.constant 0 : index
    %100 = vector.load %arg8[%c1_174, %c1_175, %c0_176] : memref<10x10x8xf32, #tpu.memory_space<vmem>>, vector<8x8x8xf32>
    tpu.vector_store %arg8[%c1_174, %c1_175, %c0_176], %99 {strides = array<i32>} : memref<10x10x8xf32, #tpu.memory_space<vmem>>, vector<8x8x8xf32>,
    %c0_177 = arith.constant 0 : index
    %c0_178 = arith.constant 0 : index
    %c0_179 = arith.constant 0 : index
    %101 = vector.load %arg8[%c0_177, %c0_178, %c0_179] : memref<10x10x8xf32, #tpu.memory_space<vmem>>, vector<8x8x8xf32>
    %c0_180 = arith.constant 0 : index
    %c1_181 = arith.constant 1 : index
    %c0_182 = arith.constant 0 : index
    %102 = vector.load %arg8[%c0_180, %c1_181, %c0_182] : memref<10x10x8xf32, #tpu.memory_space<vmem>>, vector<8x8x8xf32>
    %c0_183 = arith.constant 0 : index
    %c2_184 = arith.constant 2 : index
    %c0_185 = arith.constant 0 : index
    %103 = vector.load %arg8[%c0_183, %c2_184, %c0_185] : memref<10x10x8xf32, #tpu.memory_space<vmem>>, vector<8x8x8xf32>
    %c1_186 = arith.constant 1 : index
    %c0_187 = arith.constant 0 : index
    %c0_188 = arith.constant 0 : index
    %104 = vector.load %arg8[%c1_186, %c0_187, %c0_188] : memref<10x10x8xf32, #tpu.memory_space<vmem>>, vector<8x8x8xf32>
    %c1_189 = arith.constant 1 : index
    %c1_190 = arith.constant 1 : index
    %c0_191 = arith.constant 0 : index
    %105 = vector.load %arg8[%c1_189, %c1_190, %c0_191] : memref<10x10x8xf32, #tpu.memory_space<vmem>>, vector<8x8x8xf32>
    %c1_192 = arith.constant 1 : index
    %c2_193 = arith.constant 2 : index
    %c0_194 = arith.constant 0 : index
    %106 = vector.load %arg8[%c1_192, %c2_193, %c0_194] : memref<10x10x8xf32, #tpu.memory_space<vmem>>, vector<8x8x8xf32>
    %c2_195 = arith.constant 2 : index
    %c0_196 = arith.constant 0 : index
    %c0_197 = arith.constant 0 : index
    %107 = vector.load %arg8[%c2_195, %c0_196, %c0_197] : memref<10x10x8xf32, #tpu.memory_space<vmem>>, vector<8x8x8xf32>
    %c2_198 = arith.constant 2 : index
    %c1_199 = arith.constant 1 : index
    %c0_200 = arith.constant 0 : index
    %108 = vector.load %arg8[%c2_198, %c1_199, %c0_200] : memref<10x10x8xf32, #tpu.memory_space<vmem>>, vector<8x8x8xf32>
    %c2_201 = arith.constant 2 : index
    %c2_202 = arith.constant 2 : index
    %c0_203 = arith.constant 0 : index
    %109 = vector.load %arg8[%c2_201, %c2_202, %c0_203] : memref<10x10x8xf32, #tpu.memory_space<vmem>>, vector<8x8x8xf32>
    %110 = tpu.concatenate %101, %102, %103, %104, %105, %106, %107, %108, %109 in 2 : vector<8x8x8xf32>, vector<8x8x8xf32>, vector<8x8x8xf32>, vector<8x8x8xf32>, vector<8x8x8xf32>, vector<8x8x8xf32>, vector<8x8x8xf32>, vector<8x8x8xf32>, vector<8x8x8xf32> -> vector<8x8x72xf32>
    %111 = vector.shape_cast %110 : vector<8x8x72xf32> to vector<64x72xf32>
    %112 = arith.truncf %111 : vector<64x72xf32> to vector<64x72xbf16>
    %c0_204 = arith.constant 0 : index
    %c0_205 = arith.constant 0 : index
    %113 = vector.load %arg4[%c0_204, %c0_205] : memref<72x8xbf16, #tpu.memory_space<vmem>>, vector<72x8xbf16>
    %cst_206 = arith.constant dense<0.000000e+00> : vector<64x8xf32>
    %114 = tpu.matmul %112, %113, %cst_206 {dimension_numbers = #tpu.dot_dimension_numbers<[1], [0], [0], [1], [0, 0, 1, 1], [], []>} : vector<64x72xbf16>, vector<72x8xbf16>, vector<64x8xf32> -> vector<64x8xf32>
    %c0_207 = arith.constant 0 : index
    %c0_208 = arith.constant 0 : index
    %115 = vector.load %arg5[%c0_207, %c0_208] : memref<1x8xf32, #tpu.memory_space<vmem>>, vector<1x8xf32>
    %116 = vector.broadcast %115 : vector<1x8xf32> to vector<64x8xf32>
    %117 = arith.addf %114, %116 : vector<64x8xf32>
    %cst_209 = arith.constant 0.000000e+00 : f32
    %118 = vector.broadcast %cst_209 : f32 to vector<64x8xf32>
    %119 = arith.maximumf %117, %118 : vector<64x8xf32>
    %120 = vector.shape_cast %119 : vector<64x8xf32> to vector<8x8x8xf32>
    %c1_210 = arith.constant 1 : index
    %c0_211 = arith.constant 0 : index
    %c0_212 = arith.constant 0 : index
    %c0_213 = arith.constant 0 : index
    %121 = vector.load %arg6[%c1_210, %c0_211, %c0_212, %c0_213] : memref<2x8x8x8xf32, #tpu.memory_space<vmem>>, vector<1x8x8x8xf32>
    %122 = vector.shape_cast %121 : vector<1x8x8x8xf32> to vector<8x8x8xf32>
    %123 = vector.shape_cast %120 : vector<8x8x8xf32> to vector<1x8x8x8xf32>
    tpu.vector_store %arg6[%c1_210, %c0_211, %c0_212, %c0_213], %123 {strides = array<i32>} : memref<2x8x8x8xf32, #tpu.memory_space<vmem>>, vector<1x8x8x8xf32>,
    return
  }
  func.func @transform_0(%arg0: i32) -> (i32, i32, i32, i32, i32) {
    %c0_i32 = arith.constant 0 : i32
    %c0_i32_0 = arith.constant 0 : i32
    %c0_i32_1 = arith.constant 0 : i32
    %c0_i32_2 = arith.constant 0 : i32
    %c0_i32_3 = arith.constant 0 : i32
    return %arg0, %c0_i32, %c0_i32_0, %c0_i32_1, %c0_i32_2 : i32, i32, i32, i32, i32
  }
  func.func @transform_1(%arg0: i32) -> (i32, i32) {
    %c0_i32 = arith.constant 0 : i32
    %c0_i32_0 = arith.constant 0 : i32
    %c0_i32_1 = arith.constant 0 : i32
    return %c0_i32, %c0_i32_0 : i32, i32
  }
  func.func @transform_2(%arg0: i32) -> (i32, i32) {
    %c0_i32 = arith.constant 0 : i32
    %c0_i32_0 = arith.constant 0 : i32
    %c0_i32_1 = arith.constant 0 : i32
    return %c0_i32, %c0_i32_0 : i32, i32
  }
  func.func @transform_3(%arg0: i32) -> (i32, i32) {
    %c0_i32 = arith.constant 0 : i32
    %c0_i32_0 = arith.constant 0 : i32
    %c0_i32_1 = arith.constant 0 : i32
    return %c0_i32, %c0_i32_0 : i32, i32
  }
  func.func @transform_4(%arg0: i32) -> (i32, i32) {
    %c0_i32 = arith.constant 0 : i32
    %c0_i32_0 = arith.constant 0 : i32
    %c0_i32_1 = arith.constant 0 : i32
    return %c0_i32, %c0_i32_0 : i32, i32
  }
  func.func @transform_5(%arg0: i32) -> (i32, i32, i32, i32) {
    %c0_i32 = arith.constant 0 : i32
    %c0_i32_0 = arith.constant 0 : i32
    %c0_i32_1 = arith.constant 0 : i32
    %c0_i32_2 = arith.constant 0 : i32
    return %arg0, %c0_i32, %c0_i32_0, %c0_i32_1 : i32, i32, i32, i32
  }
}

</mosaic_0001>

<llo_original>
// kernel: tpu_custom_call.1
$region0: #{tpu_custom_call.1}
  #allocation0 [shape = 'u32[]', space=smem, size = 0x4, offset = 0x4, fixed_abs, tag = 'smem constant byte address 0x4 - core index']
  #allocation1 [shape = 'u32[144,128]{1,0:T(1,128)}', space=vmem, size = 0x12000, scoped, tag = 'internal scratch']
  #allocation2 [shape = 'f32[10,10,4]{2,1,0:T(8,128)}', space=vmem, size = 0x14000, scoped, tag = 'scratch operand']
  #allocation3 [shape = 'f32[10,10,8]{2,1,0:T(8,128)}', space=vmem, size = 0x14000, scoped, tag = 'scratch operand']
  %s0 = inlined_call_operand.hbm [shape: f32[2,8,2,8,8], index: 0, kind: input, shape index: {}]
  %s1 = inlined_call_operand.vmem [shape: bf16[36,8], index: 1, kind: input, shape index: {}]
  %s2 = inlined_call_operand.vmem [shape: f32[1,8], index: 2, kind: input, shape index: {}]
  %s3 = inlined_call_operand.vmem [shape: bf16[72,8], index: 3, kind: input, shape index: {}]
  %s4 = inlined_call_operand.vmem [shape: f32[1,8], index: 4, kind: input, shape index: {}]
  %s5 = inlined_call_operand.hbm [shape: f32[2,8,8,8], index: 5, kind: output, shape index: {}]
  %s6 = sld [smem:[#allocation0]]
  $region34: #{tpu_custom_call.1} parent=0
    _
  %s8 = ssub.s32 1, %s6
  %s9 = scalar_select 0, %s8, %s6
  $region1: #{tpu_custom_call.1} parent=0
    #allocation4 [shape = 'u8[131072]{0}', space=vmem, size = 0x20000, scoped, tag = 'input window, operand 0, single buffered']
    #allocation5 [shape = 's32[1]{0}', space=sflag, size = 0x4, scoped, tag = 'scoped memory for tpu_custom_call.1']
    #allocation6 [shape = 's32[1]{0}', space=sflag, size = 0x4, scoped, tag = 'scoped memory for tpu_custom_call.1']
    #allocation7 [shape = 'u8[65536]{0}', space=vmem, size = 0x10000, scoped, tag = 'output window, operand 0, single buffered']
    %10 = vsyncpa [#allocation5], 0
    %11 = vsyncpa [#allocation6], 0
    // Predicated region
    $region2: #{tpu_custom_call.1} parent=1 // pred_check
      _
    $region3: #{tpu_custom_call.1} parent=1 // pred_check_branch
      %13 = sbr.rel (0) target = $region5
    $region4: #{tpu_custom_call.1} parent=1 // pred_region
      %s15 = ssub.s32 4096, 4096
      %16 = vsyncadd [#allocation5], %s15
      %s17 = sshll.u32 [#allocation4], 4
      %s18 = int_to_ptr.vmem [resolvable:$true] %s17
      %23 = dma.hbm_to_vmem [thread:$0]  %s0, 4096, %s18, [#allocation5], 128, 128, 8
    $region5: #{tpu_custom_call.1} parent=1 // pred_fallthru
      _
    // Predicated region
    $region6: #{tpu_custom_call.1} parent=1 // pred_check
      _
    $region7: #{tpu_custom_call.1} parent=1 // pred_check_branch
      %25 = sbr.rel (0) target = $region9
    $region8: #{tpu_custom_call.1} parent=1 // pred_region
      _
    $region9: #{tpu_custom_call.1} parent=1 // pred_fallthru
      _
    // Predicated region
    $region10: #{tpu_custom_call.1} parent=1 // pred_check
      _
    $region11: #{tpu_custom_call.1} parent=1 // pred_check_branch
      %27 = sbr.rel (0) target = $region13
    $region12: #{tpu_custom_call.1} parent=1 // pred_region
      _
    $region13: #{tpu_custom_call.1} parent=1 // pred_fallthru
      _
    // Predicated region
    $region14: #{tpu_custom_call.1} parent=1 // pred_check
      _
    $region15: #{tpu_custom_call.1} parent=1 // pred_check_branch
      %29 = sbr.rel (0) target = $region17
    $region16: #{tpu_custom_call.1} parent=1 // pred_region
      _
    $region17: #{tpu_custom_call.1} parent=1 // pred_fallthru
      _
    // Predicated region
    $region18: #{tpu_custom_call.1} parent=1 // pred_check
      _
    $region19: #{tpu_custom_call.1} parent=1 // pred_check_branch
      %31 = sbr.rel (0) target = $region21
    $region20: #{tpu_custom_call.1} parent=1 // pred_region
      _
    $region21: #{tpu_custom_call.1} parent=1 // pred_fallthru
      _
    // Predicated region
    $region22: #{tpu_custom_call.1} parent=1 // pred_check
      _
    $region23: #{tpu_custom_call.1} parent=1 // pred_check_branch
      %33 = sbr.rel (0) target = $region25
    $region24: #{tpu_custom_call.1} parent=1 // pred_region
      %34 = dma.done [#allocation5], 4096
    $region25: #{tpu_custom_call.1} parent=1 // pred_fallthru
      _
    %vm36 = vcmask 31744
    %37 = vst.msk [vmem:[#allocation2] sm:$0xff] %vm36, 0.0
    %vm38 = vcmask 25600
    %39 = vst.msk [vmem:[#allocation2 + $0x8] sm:$0x3] %vm38, 0.0
    %s40 = scalar_lea.vmem [#allocation2], 144
    %41 = vst.msk [vmem:[%s40] sm:$0xff] %vm36, 0.0
    %42 = vst.msk [vmem:[%s40 + $0x8] sm:$0x3] %vm38, 0.0
    %vm43 = vcmask 24576
    %44 = vst.msk [vmem:[#allocation2] sm:$0x1] %vm43, 0.0
    %45 = vst.msk [vmem:[#allocation2 + $0x10] sm:$0x1] %vm43, 0.0
    %46 = vst.msk [vmem:[#allocation2 + $0x20] sm:$0x1] %vm43, 0.0
    %47 = vst.msk [vmem:[#allocation2 + $0x30] sm:$0x1] %vm43, 0.0
    %48 = vst.msk [vmem:[#allocation2 + $0x40] sm:$0x1] %vm43, 0.0
    %49 = vst.msk [vmem:[#allocation2 + $0x50] sm:$0x1] %vm43, 0.0
    %50 = vst.msk [vmem:[#allocation2 + $0x60] sm:$0x1] %vm43, 0.0
    %51 = vst.msk [vmem:[#allocation2 + $0x70] sm:$0x1] %vm43, 0.0
    %52 = vst.msk [vmem:[#allocation2 + $0x80] sm:$0x1] %vm43, 0.0
    %53 = vst.msk [vmem:[#allocation2 + $0x90] sm:$0x1] %vm43, 0.0
    %54 = vst.msk [vmem:[#allocation2 + $0x9] sm:$0x1] %vm43, 0.0
    %55 = vst.msk [vmem:[#allocation2 + $0x19] sm:$0x1] %vm43, 0.0
    %56 = vst.msk [vmem:[#allocation2 + $0x29] sm:$0x1] %vm43, 0.0
    %57 = vst.msk [vmem:[#allocation2 + $0x39] sm:$0x1] %vm43, 0.0
    %58 = vst.msk [vmem:[#allocation2 + $0x49] sm:$0x1] %vm43, 0.0
    %59 = vst.msk [vmem:[#allocation2 + $0x59] sm:$0x1] %vm43, 0.0
    %60 = vst.msk [vmem:[#allocation2 + $0x69] sm:$0x1] %vm43, 0.0
    %61 = vst.msk [vmem:[#allocation2 + $0x79] sm:$0x1] %vm43, 0.0
    %62 = vst.msk [vmem:[#allocation2 + $0x89] sm:$0x1] %vm43, 0.0
    %63 = vst.msk [vmem:[#allocation2 + $0x99] sm:$0x1] %vm43, 0.0
    %vm64 = vcmask 64512
    %65 = vst.msk [vmem:[#allocation3] sm:$0xff] %vm64, 0.0
    %vm66 = vcmask 58368
    %67 = vst.msk [vmem:[#allocation3 + $0x8] sm:$0x3] %vm66, 0.0
    %s68 = scalar_lea.vmem [#allocation3], 144
    %69 = vst.msk [vmem:[%s68] sm:$0xff] %vm64, 0.0
    %70 = vst.msk [vmem:[%s68 + $0x8] sm:$0x3] %vm66, 0.0
    %vm71 = vcmask 57344
    %72 = vst.msk [vmem:[#allocation3] sm:$0x1] %vm71, 0.0
    %73 = vst.msk [vmem:[#allocation3 + $0x10] sm:$0x1] %vm71, 0.0
    %74 = vst.msk [vmem:[#allocation3 + $0x20] sm:$0x1] %vm71, 0.0
    %75 = vst.msk [vmem:[#allocation3 + $0x30] sm:$0x1] %vm71, 0.0
    %76 = vst.msk [vmem:[#allocation3 + $0x40] sm:$0x1] %vm71, 0.0
    %77 = vst.msk [vmem:[#allocation3 + $0x50] sm:$0x1] %vm71, 0.0
    %78 = vst.msk [vmem:[#allocation3 + $0x60] sm:$0x1] %vm71, 0.0
    %79 = vst.msk [vmem:[#allocation3 + $0x70] sm:$0x1] %vm71, 0.0
    %80 = vst.msk [vmem:[#allocation3 + $0x80] sm:$0x1] %vm71, 0.0
    %81 = vst.msk [vmem:[#allocation3 + $0x90] sm:$0x1] %vm71, 0.0
    %82 = vst.msk [vmem:[#allocation3 + $0x9] sm:$0x1] %vm71, 0.0
    %83 = vst.msk [vmem:[#allocation3 + $0x19] sm:$0x1] %vm71, 0.0
    %84 = vst.msk [vmem:[#allocation3 + $0x29] sm:$0x1] %vm71, 0.0
    %85 = vst.msk [vmem:[#allocation3 + $0x39] sm:$0x1] %vm71, 0.0
    %86 = vst.msk [vmem:[#allocation3 + $0x49] sm:$0x1] %vm71, 0.0
    %87 = vst.msk [vmem:[#allocation3 + $0x59] sm:$0x1] %vm71, 0.0
    %88 = vst.msk [vmem:[#allocation3 + $0x69] sm:$0x1] %vm71, 0.0
    %89 = vst.msk [vmem:[#allocation3 + $0x79] sm:$0x1] %vm71, 0.0
    %90 = vst.msk [vmem:[#allocation3 + $0x89] sm:$0x1] %vm71, 0.0
    %91 = vst.msk [vmem:[#allocation3 + $0x99] sm:$0x1] %vm71, 0.0
    %v92 = vld [vmem:[#allocation4] sm:$0xff]
    %v93 = vld [vmem:[#allocation4 + $0x10] sm:$0xff]
    %v94 = vld [vmem:[#allocation4 + $0x20] sm:$0xff]
    %v95 = vld [vmem:[#allocation4 + $0x30] sm:$0xff]
    %v96 = vld [vmem:[#allocation4 + $0x40] sm:$0xff]
    %v97 = vld [vmem:[#allocation4 + $0x50] sm:$0xff]
    %v98 = vld [vmem:[#allocation4 + $0x60] sm:$0xff]
    %v99 = vld [vmem:[#allocation4 + $0x70] sm:$0xff]
    %s100 = scalar_lea.vmem [#allocation4], 8
    %v101 = vld [vmem:[%s100] sm:$0xff]
    %v102 = vld [vmem:[%s100 + $0x10] sm:$0xff]
    %v103 = vld [vmem:[%s100 + $0x20] sm:$0xff]
    %v104 = vld [vmem:[%s100 + $0x30] sm:$0xff]
    %v105 = vld [vmem:[%s100 + $0x40] sm:$0xff]
    %v106 = vld [vmem:[%s100 + $0x50] sm:$0xff]
    %v107 = vld [vmem:[%s100 + $0x60] sm:$0xff]
    %v108 = vld [vmem:[%s100 + $0x70] sm:$0xff]
    %117 = vrot.lane.b32.xlu0 %v92, 124
    %v118 = vpop.permute.xlu0 %117
    %119 = vrot.lane.b32.xlu0 %v93, 124
    %v120 = vpop.permute.xlu0 %119
    %121 = vrot.lane.b32.xlu0 %v94, 124
    %v122 = vpop.permute.xlu0 %121
    %123 = vrot.lane.b32.xlu0 %v95, 124
    %v124 = vpop.permute.xlu0 %123
    %125 = vrot.lane.b32.xlu0 %v96, 124
    %v126 = vpop.permute.xlu0 %125
    %127 = vrot.lane.b32.xlu0 %v97, 124
    %v128 = vpop.permute.xlu0 %127
    %129 = vrot.lane.b32.xlu0 %v98, 124
    %v130 = vpop.permute.xlu0 %129
    %131 = vrot.lane.b32.xlu0 %v99, 124
    %v132 = vpop.permute.xlu0 %131
    %v141 = vmax.f32 %v92, %v118
    %v142 = vmax.f32 %v93, %v120
    %v143 = vmax.f32 %v94, %v122
    %v144 = vmax.f32 %v95, %v124
    %v145 = vmax.f32 %v96, %v126
    %v146 = vmax.f32 %v97, %v128
    %v147 = vmax.f32 %v98, %v130
    %v148 = vmax.f32 %v99, %v132
    %157 = vrot.lane.b32.xlu0 %v101, 124
    %v158 = vpop.permute.xlu0 %157
    %159 = vrot.lane.b32.xlu0 %v102, 124
    %v160 = vpop.permute.xlu0 %159
    %161 = vrot.lane.b32.xlu0 %v103, 124
    %v162 = vpop.permute.xlu0 %161
    %163 = vrot.lane.b32.xlu0 %v104, 124
    %v164 = vpop.permute.xlu0 %163
    %165 = vrot.lane.b32.xlu0 %v105, 124
    %v166 = vpop.permute.xlu0 %165
    %167 = vrot.lane.b32.xlu0 %v106, 124
    %v168 = vpop.permute.xlu0 %167
    %169 = vrot.lane.b32.xlu0 %v107, 124
    %v170 = vpop.permute.xlu0 %169
    %171 = vrot.lane.b32.xlu0 %v108, 124
    %v172 = vpop.permute.xlu0 %171
    %v181 = vmax.f32 %v101, %v158
    %v182 = vmax.f32 %v102, %v160
    %v183 = vmax.f32 %v103, %v162
    %v184 = vmax.f32 %v104, %v164
    %v185 = vmax.f32 %v105, %v166
    %v186 = vmax.f32 %v106, %v168
    %v187 = vmax.f32 %v107, %v170
    %v188 = vmax.f32 %v108, %v172
    %v189 = vmax.f32 %v141, %v181
    %v190 = vmax.f32 %v142, %v182
    %v191 = vmax.f32 %v143, %v183
    %v192 = vmax.f32 %v144, %v184
    %v193 = vmax.f32 %v145, %v185
    %v194 = vmax.f32 %v146, %v186
    %v195 = vmax.f32 %v147, %v187
    %v196 = vmax.f32 %v148, %v188
    %s197 = scalar_lea.vmem [#allocation2], 16
    %198 = vst.msk [vmem:[%s197 + $0x1] sm:$0xff] %vm36, %v189
    %199 = vst.msk [vmem:[%s197 + $0x11] sm:$0xff] %vm36, %v190
    %200 = vst.msk [vmem:[%s197 + $0x21] sm:$0xff] %vm36, %v191
    %201 = vst.msk [vmem:[%s197 + $0x31] sm:$0xff] %vm36, %v192
    %202 = vst.msk [vmem:[%s197 + $0x41] sm:$0xff] %vm36, %v193
    %203 = vst.msk [vmem:[%s197 + $0x51] sm:$0xff] %vm36, %v194
    %204 = vst.msk [vmem:[%s197 + $0x61] sm:$0xff] %vm36, %v195
    %205 = vst.msk [vmem:[%s197 + $0x71] sm:$0xff] %vm36, %v196
    %v206 = vld [vmem:[#allocation2] sm:$0xff]
    %v207 = vld [vmem:[#allocation2 + $0x10] sm:$0xff]
    %v208 = vld [vmem:[#allocation2 + $0x20] sm:$0xff]
    %v209 = vld [vmem:[#allocation2 + $0x30] sm:$0xff]
    %v210 = vld [vmem:[#allocation2 + $0x40] sm:$0xff]
    %v211 = vld [vmem:[#allocation2 + $0x50] sm:$0xff]
    %v212 = vld [vmem:[#allocation2 + $0x60] sm:$0xff]
    %v213 = vld [vmem:[#allocation2 + $0x70] sm:$0xff]
    %v214 = vld [vmem:[#allocation2 + $0x1] sm:$0xff]
    %v215 = vld [vmem:[#allocation2 + $0x11] sm:$0xff]
    %v216 = vld [vmem:[#allocation2 + $0x21] sm:$0xff]
    %v217 = vld [vmem:[#allocation2 + $0x31] sm:$0xff]
    %v218 = vld [vmem:[#allocation2 + $0x41] sm:$0xff]
    %v219 = vld [vmem:[#allocation2 + $0x51] sm:$0xff]
    %v220 = vld [vmem:[#allocation2 + $0x61] sm:$0xff]
    %v221 = vld [vmem:[#allocation2 + $0x71] sm:$0xff]
    %v222 = vld [vmem:[#allocation2 + $0x2] sm:$0xff]
    %v223 = vld [vmem:[#allocation2 + $0x12] sm:$0xff]
    %v224 = vld [vmem:[#allocation2 + $0x22] sm:$0xff]
    %v225 = vld [vmem:[#allocation2 + $0x32] sm:$0xff]
    %v226 = vld [vmem:[#allocation2 + $0x42] sm:$0xff]
    %v227 = vld [vmem:[#allocation2 + $0x52] sm:$0xff]
    %v228 = vld [vmem:[#allocation2 + $0x62] sm:$0xff]
    %v229 = vld [vmem:[#allocation2 + $0x72] sm:$0xff]
    %v230 = vld [vmem:[%s197] sm:$0xff]
    %v231 = vld [vmem:[%s197 + $0x10] sm:$0xff]
    %v232 = vld [vmem:[%s197 + $0x20] sm:$0xff]
    %v233 = vld [vmem:[%s197 + $0x30] sm:$0xff]
    %v234 = vld [vmem:[%s197 + $0x40] sm:$0xff]
    %v235 = vld [vmem:[%s197 + $0x50] sm:$0xff]
    %v236 = vld [vmem:[%s197 + $0x60] sm:$0xff]
    %v237 = vld [vmem:[%s197 + $0x70] sm:$0xff]
    %v238 = vld [vmem:[%s197 + $0x1] sm:$0xff]
    %v239 = vld [vmem:[%s197 + $0x11] sm:$0xff]
    %v240 = vld [vmem:[%s197 + $0x21] sm:$0xff]
    %v241 = vld [vmem:[%s197 + $0x31] sm:$0xff]
    %v242 = vld [vmem:[%s197 + $0x41] sm:$0xff]
    %v243 = vld [vmem:[%s197 + $0x51] sm:$0xff]
    %v244 = vld [vmem:[%s197 + $0x61] sm:$0xff]
    %v245 = vld [vmem:[%s197 + $0x71] sm:$0xff]
    %v246 = vld [vmem:[%s197 + $0x2] sm:$0xff]
    %v247 = vld [vmem:[%s197 + $0x12] sm:$0xff]
    %v248 = vld [vmem:[%s197 + $0x22] sm:$0xff]
    %v249 = vld [vmem:[%s197 + $0x32] sm:$0xff]
    %v250 = vld [vmem:[%s197 + $0x42] sm:$0xff]
    %v251 = vld [vmem:[%s197 + $0x52] sm:$0xff]
    %v252 = vld [vmem:[%s197 + $0x62] sm:$0xff]
    %v253 = vld [vmem:[%s197 + $0x72] sm:$0xff]
    %s254 = scalar_lea.vmem [#allocation2], 32
    %v255 = vld [vmem:[%s254] sm:$0xff]
    %v256 = vld [vmem:[%s254 + $0x10] sm:$0xff]
    %v257 = vld [vmem:[%s254 + $0x20] sm:$0xff]
    %v258 = vld [vmem:[%s254 + $0x30] sm:$0xff]
    %v259 = vld [vmem:[%s254 + $0x40] sm:$0xff]
    %v260 = vld [vmem:[%s254 + $0x50] sm:$0xff]
    %v261 = vld [vmem:[%s254 + $0x60] sm:$0xff]
    %v262 = vld [vmem:[%s254 + $0x70] sm:$0xff]
    %v263 = vld [vmem:[%s254 + $0x1] sm:$0xff]
    %v264 = vld [vmem:[%s254 + $0x11] sm:$0xff]
    %v265 = vld [vmem:[%s254 + $0x21] sm:$0xff]
    %v266 = vld [vmem:[%s254 + $0x31] sm:$0xff]
    %v267 = vld [vmem:[%s254 + $0x41] sm:$0xff]
    %v268 = vld [vmem:[%s254 + $0x51] sm:$0xff]
    %v269 = vld [vmem:[%s254 + $0x61] sm:$0xff]
    %v270 = vld [vmem:[%s254 + $0x71] sm:$0xff]
    %v271 = vld [vmem:[%s254 + $0x2] sm:$0xff]
    %v272 = vld [vmem:[%s254 + $0x12] sm:$0xff]
    %v273 = vld [vmem:[%s254 + $0x22] sm:$0xff]
    %v274 = vld [vmem:[%s254 + $0x32] sm:$0xff]
    %v275 = vld [vmem:[%s254 + $0x42] sm:$0xff]
    %v276 = vld [vmem:[%s254 + $0x52] sm:$0xff]
    %v277 = vld [vmem:[%s254 + $0x62] sm:$0xff]
    %v278 = vld [vmem:[%s254 + $0x72] sm:$0xff]
    %287 = vrot.lane.b32.xlu0 %v214, 4
    %v288 = vpop.permute.xlu0 %287
    %289 = vrot.lane.b32.xlu0 %v215, 4
    %v290 = vpop.permute.xlu0 %289
    %291 = vrot.lane.b32.xlu0 %v216, 4
    %v292 = vpop.permute.xlu0 %291
    %293 = vrot.lane.b32.xlu0 %v217, 4
    %v294 = vpop.permute.xlu0 %293
    %295 = vrot.lane.b32.xlu0 %v218, 4
    %v296 = vpop.permute.xlu0 %295
    %297 = vrot.lane.b32.xlu0 %v219, 4
    %v298 = vpop.permute.xlu0 %297
    %299 = vrot.lane.b32.xlu0 %v220, 4
    %v300 = vpop.permute.xlu0 %299
    %301 = vrot.lane.b32.xlu0 %v221, 4
    %v302 = vpop.permute.xlu0 %301
    %319 = vrot.lane.b32.xlu0 %v222, 8
    %v320 = vpop.permute.xlu0 %319
    %321 = vrot.lane.b32.xlu0 %v223, 8
    %v322 = vpop.permute.xlu0 %321
    %323 = vrot.lane.b32.xlu0 %v224, 8
    %v324 = vpop.permute.xlu0 %323
    %325 = vrot.lane.b32.xlu0 %v225, 8
    %v326 = vpop.permute.xlu0 %325
    %327 = vrot.lane.b32.xlu0 %v226, 8
    %v328 = vpop.permute.xlu0 %327
    %329 = vrot.lane.b32.xlu0 %v227, 8
    %v330 = vpop.permute.xlu0 %329
    %331 = vrot.lane.b32.xlu0 %v228, 8
    %v332 = vpop.permute.xlu0 %331
    %333 = vrot.lane.b32.xlu0 %v229, 8
    %v334 = vpop.permute.xlu0 %333
    %351 = vrot.lane.b32.xlu0 %v230, 12
    %v352 = vpop.permute.xlu0 %351
    %353 = vrot.lane.b32.xlu0 %v231, 12
    %v354 = vpop.permute.xlu0 %353
    %355 = vrot.lane.b32.xlu0 %v232, 12
    %v356 = vpop.permute.xlu0 %355
    %357 = vrot.lane.b32.xlu0 %v233, 12
    %v358 = vpop.permute.xlu0 %357
    %359 = vrot.lane.b32.xlu0 %v234, 12
    %v360 = vpop.permute.xlu0 %359
    %361 = vrot.lane.b32.xlu0 %v235, 12
    %v362 = vpop.permute.xlu0 %361
    %363 = vrot.lane.b32.xlu0 %v236, 12
    %v364 = vpop.permute.xlu0 %363
    %365 = vrot.lane.b32.xlu0 %v237, 12
    %v366 = vpop.permute.xlu0 %365
    %383 = vrot.lane.b32.xlu0 %v238, 16
    %v384 = vpop.permute.xlu0 %383
    %385 = vrot.lane.b32.xlu0 %v239, 16
    %v386 = vpop.permute.xlu0 %385
    %387 = vrot.lane.b32.xlu0 %v240, 16
    %v388 = vpop.permute.xlu0 %387
    %389 = vrot.lane.b32.xlu0 %v241, 16
    %v390 = vpop.permute.xlu0 %389
    %391 = vrot.lane.b32.xlu0 %v242, 16
    %v392 = vpop.permute.xlu0 %391
    %393 = vrot.lane.b32.xlu0 %v243, 16
    %v394 = vpop.permute.xlu0 %393
    %395 = vrot.lane.b32.xlu0 %v244, 16
    %v396 = vpop.permute.xlu0 %395
    %397 = vrot.lane.b32.xlu0 %v245, 16
    %v398 = vpop.permute.xlu0 %397
    %415 = vrot.lane.b32.xlu0 %v246, 20
    %v416 = vpop.permute.xlu0 %415
    %417 = vrot.lane.b32.xlu0 %v247, 20
    %v418 = vpop.permute.xlu0 %417
    %419 = vrot.lane.b32.xlu0 %v248, 20
    %v420 = vpop.permute.xlu0 %419
    %421 = vrot.lane.b32.xlu0 %v249, 20
    %v422 = vpop.permute.xlu0 %421
    %423 = vrot.lane.b32.xlu0 %v250, 20
    %v424 = vpop.permute.xlu0 %423
    %425 = vrot.lane.b32.xlu0 %v251, 20
    %v426 = vpop.permute.xlu0 %425
    %427 = vrot.lane.b32.xlu0 %v252, 20
    %v428 = vpop.permute.xlu0 %427
    %429 = vrot.lane.b32.xlu0 %v253, 20
    %v430 = vpop.permute.xlu0 %429
    %447 = vrot.lane.b32.xlu0 %v255, 24
    %v448 = vpop.permute.xlu0 %447
    %449 = vrot.lane.b32.xlu0 %v256, 24
    %v450 = vpop.permute.xlu0 %449
    %451 = vrot.lane.b32.xlu0 %v257, 24
    %v452 = vpop.permute.xlu0 %451
    %453 = vrot.lane.b32.xlu0 %v258, 24
    %v454 = vpop.permute.xlu0 %453
    %455 = vrot.lane.b32.xlu0 %v259, 24
    %v456 = vpop.permute.xlu0 %455
    %457 = vrot.lane.b32.xlu0 %v260, 24
    %v458 = vpop.permute.xlu0 %457
    %459 = vrot.lane.b32.xlu0 %v261, 24
    %v460 = vpop.permute.xlu0 %459
    %461 = vrot.lane.b32.xlu0 %v262, 24
    %v462 = vpop.permute.xlu0 %461
    %479 = vrot.lane.b32.xlu0 %v263, 28
    %v480 = vpop.permute.xlu0 %479
    %481 = vrot.lane.b32.xlu0 %v264, 28
    %v482 = vpop.permute.xlu0 %481
    %483 = vrot.lane.b32.xlu0 %v265, 28
    %v484 = vpop.permute.xlu0 %483
    %485 = vrot.lane.b32.xlu0 %v266, 28
    %v486 = vpop.permute.xlu0 %485
    %487 = vrot.lane.b32.xlu0 %v267, 28
    %v488 = vpop.permute.xlu0 %487
    %489 = vrot.lane.b32.xlu0 %v268, 28
    %v490 = vpop.permute.xlu0 %489
    %491 = vrot.lane.b32.xlu0 %v269, 28
    %v492 = vpop.permute.xlu0 %491
    %493 = vrot.lane.b32.xlu0 %v270, 28
    %v494 = vpop.permute.xlu0 %493
    %511 = vrot.lane.b32.xlu0 %v271, 32
    %v512 = vpop.permute.xlu0 %511
    %513 = vrot.lane.b32.xlu0 %v272, 32
    %v514 = vpop.permute.xlu0 %513
    %515 = vrot.lane.b32.xlu0 %v273, 32
    %v516 = vpop.permute.xlu0 %515
    %517 = vrot.lane.b32.xlu0 %v274, 32
    %v518 = vpop.permute.xlu0 %517
    %519 = vrot.lane.b32.xlu0 %v275, 32
    %v520 = vpop.permute.xlu0 %519
    %521 = vrot.lane.b32.xlu0 %v276, 32
    %v522 = vpop.permute.xlu0 %521
    %523 = vrot.lane.b32.xlu0 %v277, 32
    %v524 = vpop.permute.xlu0 %523
    %525 = vrot.lane.b32.xlu0 %v278, 32
    %v526 = vpop.permute.xlu0 %525
    %v535 = vsel %vm36, %v206, %v288
    %v536 = vsel %vm36, %v207, %v290
    %v537 = vsel %vm36, %v208, %v292
    %v538 = vsel %vm36, %v209, %v294
    %v539 = vsel %vm36, %v210, %v296
    %v540 = vsel %vm36, %v211, %v298
    %v541 = vsel %vm36, %v212, %v300
    %v542 = vsel %vm36, %v213, %v302
    %v543 = vsel %vm64, %v535, %v320
    %v544 = vsel %vm64, %v536, %v322
    %v545 = vsel %vm64, %v537, %v324
    %v546 = vsel %vm64, %v538, %v326
    %v547 = vsel %vm64, %v539, %v328
    %v548 = vsel %vm64, %v540, %v330
    %v549 = vsel %vm64, %v541, %v332
    %v550 = vsel %vm64, %v542, %v334
    %vm551 = vcmask 97280
    %v552 = vsel %vm551, %v543, %v352
    %v553 = vsel %vm551, %v544, %v354
    %v554 = vsel %vm551, %v545, %v356
    %v555 = vsel %vm551, %v546, %v358
    %v556 = vsel %vm551, %v547, %v360
    %v557 = vsel %vm551, %v548, %v362
    %v558 = vsel %vm551, %v549, %v364
    %v559 = vsel %vm551, %v550, %v366
    %vm560 = vcmask 130048
    %v561 = vsel %vm560, %v552, %v384
    %v562 = vsel %vm560, %v553, %v386
    %v563 = vsel %vm560, %v554, %v388
    %v564 = vsel %vm560, %v555, %v390
    %v565 = vsel %vm560, %v556, %v392
    %v566 = vsel %vm560, %v557, %v394
    %v567 = vsel %vm560, %v558, %v396
    %v568 = vsel %vm560, %v559, %v398
    %vm569 = vcmask 162816
    %v570 = vsel %vm569, %v561, %v416
    %v571 = vsel %vm569, %v562, %v418
    %v572 = vsel %vm569, %v563, %v420
    %v573 = vsel %vm569, %v564, %v422
    %v574 = vsel %vm569, %v565, %v424
    %v575 = vsel %vm569, %v566, %v426
    %v576 = vsel %vm569, %v567, %v428
    %v577 = vsel %vm569, %v568, %v430
    %vm578 = vcmask 195584
    %v579 = vsel %vm578, %v570, %v448
    %v580 = vsel %vm578, %v571, %v450
    %v581 = vsel %vm578, %v572, %v452
    %v582 = vsel %vm578, %v573, %v454
    %v583 = vsel %vm578, %v574, %v456
    %v584 = vsel %vm578, %v575, %v458
    %v585 = vsel %vm578, %v576, %v460
    %v586 = vsel %vm578, %v577, %v462
    %vm587 = vcmask 228352
    %v588 = vsel %vm587, %v579, %v480
    %v589 = vsel %vm587, %v580, %v482
    %v590 = vsel %vm587, %v581, %v484
    %v591 = vsel %vm587, %v582, %v486
    %v592 = vsel %vm587, %v583, %v488
    %v593 = vsel %vm587, %v584, %v490
    %v594 = vsel %vm587, %v585, %v492
    %v595 = vsel %vm587, %v586, %v494
    %vm596 = vcmask 261120
    %v597 = vsel %vm596, %v588, %v512
    %v598 = vsel %vm596, %v589, %v514
    %v599 = vsel %vm596, %v590, %v516
    %v600 = vsel %vm596, %v591, %v518
    %v601 = vsel %vm596, %v592, %v520
    %v602 = vsel %vm596, %v593, %v522
    %v603 = vsel %vm596, %v594, %v524
    %v604 = vsel %vm596, %v595, %v526
    %v605 = vpack.c.bf16 %v598, %v597
    %v606 = vpack.c.bf16 %v600, %v599
    %v607 = vpack.c.bf16 %v602, %v601
    %v608 = vpack.c.bf16 %v604, %v603
    %v609 = vld [vmem:[%s1] sm:$0xf]
    %v610 = vld [vmem:[%s1 + $0x4] sm:$0xf]
    %v611 = vld [vmem:[%s1 + $0x8] sm:$0xf]
    %v612 = vld [vmem:[%s1 + $0xc] sm:$0xf]
    %v613 = vld [vmem:[%s1 + $0x10] sm:$0x3]
    %v614 = vld [vmem:[%s2] sm:$0x1]
    %v616 = vlaneseq
    %v617 = vshrl.u32 %v616, 7
    %v618 = vsub.s32 0, %v617
    %v619 = vrot.slane %v614, %v618
    %v626 = vunpack.c.l.b16 %v609
    %v627 = vunpack.c.l.b16 %v610
    %v628 = vunpack.c.l.b16 %v611
    %v629 = vunpack.c.l.b16 %v612
    %v630 = vunpack.c.l.b16 %v613
    %v631 = vpack.c.b16 %v627, %v626
    %v632 = vpack.c.b16 %v629, %v628
    %v633 = vpack.c.b16 %v630, %v630
    %vm636 = vcmask 293888
    %v638 = vsel %vm636, %v605, 0
    %v641 = vsel %vm636, %v606, 0
    %v644 = vsel %vm636, %v607, 0
    %v647 = vsel %vm636, %v608, 0
    %vm649 = vcmask 1041408
    %v651 = vsel %vm649, %v633, 0
    %653 = vmatprep.subr.bf16.mxu0 0
    %654 = vmatpush1.bf16.msra.mxu0 0
    %655 = vmatprep.subr.bf16.mxu0 0
    %656 = vmatpush1.bf16.msra.mxu0 0
    %657 = vmatprep.subr.bf16.mxu0 0
    %658 = vmatpush1.bf16.msra.mxu0 0
    %659 = vmatprep.subr.bf16.mxu0 0
    %660 = vmatpush1.bf16.msra.mxu0 0
    %661 = vmatprep.subr.bf16.mxu0 0
    %662 = vmatpush1.bf16.msra.mxu0 0
    %663 = vmatprep.subr.bf16.mxu0 0
    %664 = vmatpush1.bf16.msra.mxu0 %v651
    %665 = vmatprep.subr.bf16.mxu0 0
    %666 = vmatpush1.bf16.msra.mxu0 %v632
    %667 = vmatprep.subr.bf16.mxu0 0
    %668 = vmatpush1.bf16.msra.mxu0 %v631
    %669 = vmatprep.subr.bf16.mxu0 0
    %670 = vmatpush2.bf16.msra.mxu0 0
    %671 = vmatprep.subr.bf16.mxu0 0
    %672 = vmatpush2.bf16.msra.mxu0 0
    %673 = vmatprep.subr.bf16.mxu0 0
    %674 = vmatpush2.bf16.msra.mxu0 0
    %675 = vmatprep.subr.bf16.mxu0 0
    %676 = vmatpush2.bf16.msra.mxu0 0
    %677 = vmatprep.subr.bf16.mxu0 0
    %678 = vmatpush2.bf16.msra.mxu0 0
    %679 = vmatprep.subr.bf16.mxu0 0
    %680 = vmatpush2.bf16.msra.mxu0 0
    %681 = vmatprep.subr.bf16.mxu0 0
    %682 = vmatpush2.bf16.msra.mxu0 0
    %683 = vmatprep.subr.bf16.mxu0 0
    %684 = vmatpush2.bf16.msra.mxu0 0
    %685 = vmatprep.mubr.bf16.mxu0 0
    %686 = vmatmul.mubr.bf16.gmra.mxu0 %v638
    %v687 = vpop.f32.mrf.mxu0
    %v688 = vadd.f32 %v619, %v687
    %v689 = vpop.f32.mrf.mxu0
    %v690 = vpop.f32.mrf.mxu0
    %v691 = vadd.f32 %v619, %v690
    %v692 = vpop.f32.mrf.mxu0
    %693 = vmatprep.mubr.bf16.mxu0 0
    %694 = vmatmul.mubr.bf16.gmra.mxu0 %v641
    %v695 = vpop.f32.mrf.mxu0
    %v696 = vadd.f32 %v619, %v695
    %v697 = vpop.f32.mrf.mxu0
    %v698 = vpop.f32.mrf.mxu0
    %v699 = vadd.f32 %v619, %v698
    %v700 = vpop.f32.mrf.mxu0
    %701 = vmatprep.mubr.bf16.mxu0 0
    %702 = vmatmul.mubr.bf16.gmra.mxu0 %v644
    %v703 = vpop.f32.mrf.mxu0
    %v704 = vadd.f32 %v619, %v703
    %v705 = vpop.f32.mrf.mxu0
    %v706 = vpop.f32.mrf.mxu0
    %v707 = vadd.f32 %v619, %v706
    %v708 = vpop.f32.mrf.mxu0
    %709 = vmatprep.mubr.bf16.mxu0 0
    %710 = vmatmul.mubr.bf16.gmra.mxu0 %v647
    %v711 = vpop.f32.mrf.mxu0
    %v712 = vadd.f32 %v619, %v711
    %v713 = vpop.f32.mrf.mxu0
    %v714 = vpop.f32.mrf.mxu0
    %v715 = vadd.f32 %v619, %v714
    %v716 = vpop.f32.mrf.mxu0
    %717 = vdwg.mxu0
    %v718 = vmax.f32 %v688, 0.0
    %v719 = vmax.f32 %v691, 0.0
    %v720 = vmax.f32 %v696, 0.0
    %v721 = vmax.f32 %v699, 0.0
    %v722 = vmax.f32 %v704, 0.0
    %v723 = vmax.f32 %v707, 0.0
    %v724 = vmax.f32 %v712, 0.0
    %v725 = vmax.f32 %v715, 0.0
    %s726 = scalar_lea.vmem [#allocation3], 16
    %727 = vst.msk [vmem:[%s726 + $0x1] sm:$0xff] %vm64, %v718
    %728 = vst.msk [vmem:[%s726 + $0x11] sm:$0xff] %vm64, %v719
    %729 = vst.msk [vmem:[%s726 + $0x21] sm:$0xff] %vm64, %v720
    %730 = vst.msk [vmem:[%s726 + $0x31] sm:$0xff] %vm64, %v721
    %731 = vst.msk [vmem:[%s726 + $0x41] sm:$0xff] %vm64, %v722
    %732 = vst.msk [vmem:[%s726 + $0x51] sm:$0xff] %vm64, %v723
    %733 = vst.msk [vmem:[%s726 + $0x61] sm:$0xff] %vm64, %v724
    %734 = vst.msk [vmem:[%s726 + $0x71] sm:$0xff] %vm64, %v725
    %v735 = vld [vmem:[#allocation3] sm:$0xff]
    %v736 = vld [vmem:[#allocation3 + $0x10] sm:$0xff]
    %v737 = vld [vmem:[#allocation3 + $0x20] sm:$0xff]
    %v738 = vld [vmem:[#allocation3 + $0x30] sm:$0xff]
    %v739 = vld [vmem:[#allocation3 + $0x40] sm:$0xff]
    %v740 = vld [vmem:[#allocation3 + $0x50] sm:$0xff]
    %v741 = vld [vmem:[#allocation3 + $0x60] sm:$0xff]
    %v742 = vld [vmem:[#allocation3 + $0x70] sm:$0xff]
    %v743 = vld [vmem:[#allocation3 + $0x1] sm:$0xff]
    %v744 = vld [vmem:[#allocation3 + $0x11] sm:$0xff]
    %v745 = vld [vmem:[#allocation3 + $0x21] sm:$0xff]
    %v746 = vld [vmem:[#allocation3 + $0x31] sm:$0xff]
    %v747 = vld [vmem:[#allocation3 + $0x41] sm:$0xff]
    %v748 = vld [vmem:[#allocation3 + $0x51] sm:$0xff]
    %v749 = vld [vmem:[#allocation3 + $0x61] sm:$0xff]
    %v750 = vld [vmem:[#allocation3 + $0x71] sm:$0xff]
    %v751 = vld [vmem:[#allocation3 + $0x2] sm:$0xff]
    %v752 = vld [vmem:[#allocation3 + $0x12] sm:$0xff]
    %v753 = vld [vmem:[#allocation3 + $0x22] sm:$0xff]
    %v754 = vld [vmem:[#allocation3 + $0x32] sm:$0xff]
    %v755 = vld [vmem:[#allocation3 + $0x42] sm:$0xff]
    %v756 = vld [vmem:[#allocation3 + $0x52] sm:$0xff]
    %v757 = vld [vmem:[#allocation3 + $0x62] sm:$0xff]
    %v758 = vld [vmem:[#allocation3 + $0x72] sm:$0xff]
    %v759 = vld [vmem:[%s726] sm:$0xff]
    %v760 = vld [vmem:[%s726 + $0x10] sm:$0xff]
    %v761 = vld [vmem:[%s726 + $0x20] sm:$0xff]
    %v762 = vld [vmem:[%s726 + $0x30] sm:$0xff]
    %v763 = vld [vmem:[%s726 + $0x40] sm:$0xff]
    %v764 = vld [vmem:[%s726 + $0x50] sm:$0xff]
    %v765 = vld [vmem:[%s726 + $0x60] sm:$0xff]
    %v766 = vld [vmem:[%s726 + $0x70] sm:$0xff]
    %v767 = vld [vmem:[%s726 + $0x1] sm:$0xff]
    %v768 = vld [vmem:[%s726 + $0x11] sm:$0xff]
    %v769 = vld [vmem:[%s726 + $0x21] sm:$0xff]
    %v770 = vld [vmem:[%s726 + $0x31] sm:$0xff]
    %v771 = vld [vmem:[%s726 + $0x41] sm:$0xff]
    %v772 = vld [vmem:[%s726 + $0x51] sm:$0xff]
    %v773 = vld [vmem:[%s726 + $0x61] sm:$0xff]
    %v774 = vld [vmem:[%s726 + $0x71] sm:$0xff]
    %v775 = vld [vmem:[%s726 + $0x2] sm:$0xff]
    %v776 = vld [vmem:[%s726 + $0x12] sm:$0xff]
    %v777 = vld [vmem:[%s726 + $0x22] sm:$0xff]
    %v778 = vld [vmem:[%s726 + $0x32] sm:$0xff]
    %v779 = vld [vmem:[%s726 + $0x42] sm:$0xff]
    %v780 = vld [vmem:[%s726 + $0x52] sm:$0xff]
    %v781 = vld [vmem:[%s726 + $0x62] sm:$0xff]
    %v782 = vld [vmem:[%s726 + $0x72] sm:$0xff]
    %s783 = scalar_lea.vmem [#allocation3], 32
    %v784 = vld [vmem:[%s783] sm:$0xff]
    %v785 = vld [vmem:[%s783 + $0x10] sm:$0xff]
    %v786 = vld [vmem:[%s783 + $0x20] sm:$0xff]
    %v787 = vld [vmem:[%s783 + $0x30] sm:$0xff]
    %v788 = vld [vmem:[%s783 + $0x40] sm:$0xff]
    %v789 = vld [vmem:[%s783 + $0x50] sm:$0xff]
    %v790 = vld [vmem:[%s783 + $0x60] sm:$0xff]
    %v791 = vld [vmem:[%s783 + $0x70] sm:$0xff]
    %v792 = vld [vmem:[%s783 + $0x1] sm:$0xff]
    %v793 = vld [vmem:[%s783 + $0x11] sm:$0xff]
    %v794 = vld [vmem:[%s783 + $0x21] sm:$0xff]
    %v795 = vld [vmem:[%s783 + $0x31] sm:$0xff]
    %v796 = vld [vmem:[%s783 + $0x41] sm:$0xff]
    %v797 = vld [vmem:[%s783 + $0x51] sm:$0xff]
    %v798 = vld [vmem:[%s783 + $0x61] sm:$0xff]
    %v799 = vld [vmem:[%s783 + $0x71] sm:$0xff]
    %v800 = vld [vmem:[%s783 + $0x2] sm:$0xff]
    %v801 = vld [vmem:[%s783 + $0x12] sm:$0xff]
    %v802 = vld [vmem:[%s783 + $0x22] sm:$0xff]
    %v803 = vld [vmem:[%s783 + $0x32] sm:$0xff]
    %v804 = vld [vmem:[%s783 + $0x42] sm:$0xff]
    %v805 = vld [vmem:[%s783 + $0x52] sm:$0xff]
    %v806 = vld [vmem:[%s783 + $0x62] sm:$0xff]
    %v807 = vld [vmem:[%s783 + $0x72] sm:$0xff]
    %816 = vrot.lane.b32.xlu0 %v743, 8
    %v817 = vpop.permute.xlu0 %816
    %818 = vrot.lane.b32.xlu0 %v744, 8
    %v819 = vpop.permute.xlu0 %818
    %820 = vrot.lane.b32.xlu0 %v745, 8
    %v821 = vpop.permute.xlu0 %820
    %822 = vrot.lane.b32.xlu0 %v746, 8
    %v823 = vpop.permute.xlu0 %822
    %824 = vrot.lane.b32.xlu0 %v747, 8
    %v825 = vpop.permute.xlu0 %824
    %826 = vrot.lane.b32.xlu0 %v748, 8
    %v827 = vpop.permute.xlu0 %826
    %828 = vrot.lane.b32.xlu0 %v749, 8
    %v829 = vpop.permute.xlu0 %828
    %830 = vrot.lane.b32.xlu0 %v750, 8
    %v831 = vpop.permute.xlu0 %830
    %848 = vrot.lane.b32.xlu0 %v751, 16
    %v849 = vpop.permute.xlu0 %848
    %850 = vrot.lane.b32.xlu0 %v752, 16
    %v851 = vpop.permute.xlu0 %850
    %852 = vrot.lane.b32.xlu0 %v753, 16
    %v853 = vpop.permute.xlu0 %852
    %854 = vrot.lane.b32.xlu0 %v754, 16
    %v855 = vpop.permute.xlu0 %854
    %856 = vrot.lane.b32.xlu0 %v755, 16
    %v857 = vpop.permute.xlu0 %856
    %858 = vrot.lane.b32.xlu0 %v756, 16
    %v859 = vpop.permute.xlu0 %858
    %860 = vrot.lane.b32.xlu0 %v757, 16
    %v861 = vpop.permute.xlu0 %860
    %862 = vrot.lane.b32.xlu0 %v758, 16
    %v863 = vpop.permute.xlu0 %862
    %880 = vrot.lane.b32.xlu0 %v759, 24
    %v881 = vpop.permute.xlu0 %880
    %882 = vrot.lane.b32.xlu0 %v760, 24
    %v883 = vpop.permute.xlu0 %882
    %884 = vrot.lane.b32.xlu0 %v761, 24
    %v885 = vpop.permute.xlu0 %884
    %886 = vrot.lane.b32.xlu0 %v762, 24
    %v887 = vpop.permute.xlu0 %886
    %888 = vrot.lane.b32.xlu0 %v763, 24
    %v889 = vpop.permute.xlu0 %888
    %890 = vrot.lane.b32.xlu0 %v764, 24
    %v891 = vpop.permute.xlu0 %890
    %892 = vrot.lane.b32.xlu0 %v765, 24
    %v893 = vpop.permute.xlu0 %892
    %894 = vrot.lane.b32.xlu0 %v766, 24
    %v895 = vpop.permute.xlu0 %894
    %912 = vrot.lane.b32.xlu0 %v767, 32
    %v913 = vpop.permute.xlu0 %912
    %914 = vrot.lane.b32.xlu0 %v768, 32
    %v915 = vpop.permute.xlu0 %914
    %916 = vrot.lane.b32.xlu0 %v769, 32
    %v917 = vpop.permute.xlu0 %916
    %918 = vrot.lane.b32.xlu0 %v770, 32
    %v919 = vpop.permute.xlu0 %918
    %920 = vrot.lane.b32.xlu0 %v771, 32
    %v921 = vpop.permute.xlu0 %920
    %922 = vrot.lane.b32.xlu0 %v772, 32
    %v923 = vpop.permute.xlu0 %922
    %924 = vrot.lane.b32.xlu0 %v773, 32
    %v925 = vpop.permute.xlu0 %924
    %926 = vrot.lane.b32.xlu0 %v774, 32
    %v927 = vpop.permute.xlu0 %926
    %944 = vrot.lane.b32.xlu0 %v775, 40
    %v945 = vpop.permute.xlu0 %944
    %946 = vrot.lane.b32.xlu0 %v776, 40
    %v947 = vpop.permute.xlu0 %946
    %948 = vrot.lane.b32.xlu0 %v777, 40
    %v949 = vpop.permute.xlu0 %948
    %950 = vrot.lane.b32.xlu0 %v778, 40
    %v951 = vpop.permute.xlu0 %950
    %952 = vrot.lane.b32.xlu0 %v779, 40
    %v953 = vpop.permute.xlu0 %952
    %954 = vrot.lane.b32.xlu0 %v780, 40
    %v955 = vpop.permute.xlu0 %954
    %956 = vrot.lane.b32.xlu0 %v781, 40
    %v957 = vpop.permute.xlu0 %956
    %958 = vrot.lane.b32.xlu0 %v782, 40
    %v959 = vpop.permute.xlu0 %958
    %976 = vrot.lane.b32.xlu0 %v784, 48
    %v977 = vpop.permute.xlu0 %976
    %978 = vrot.lane.b32.xlu0 %v785, 48
    %v979 = vpop.permute.xlu0 %978
    %980 = vrot.lane.b32.xlu0 %v786, 48
    %v981 = vpop.permute.xlu0 %980
    %982 = vrot.lane.b32.xlu0 %v787, 48
    %v983 = vpop.permute.xlu0 %982
    %984 = vrot.lane.b32.xlu0 %v788, 48
    %v985 = vpop.permute.xlu0 %984
    %986 = vrot.lane.b32.xlu0 %v789, 48
    %v987 = vpop.permute.xlu0 %986
    %988 = vrot.lane.b32.xlu0 %v790, 48
    %v989 = vpop.permute.xlu0 %988
    %990 = vrot.lane.b32.xlu0 %v791, 48
    %v991 = vpop.permute.xlu0 %990
    %1008 = vrot.lane.b32.xlu0 %v792, 56
    %v1009 = vpop.permute.xlu0 %1008
    %1010 = vrot.lane.b32.xlu0 %v793, 56
    %v1011 = vpop.permute.xlu0 %1010
    %1012 = vrot.lane.b32.xlu0 %v794, 56
    %v1013 = vpop.permute.xlu0 %1012
    %1014 = vrot.lane.b32.xlu0 %v795, 56
    %v1015 = vpop.permute.xlu0 %1014
    %1016 = vrot.lane.b32.xlu0 %v796, 56
    %v1017 = vpop.permute.xlu0 %1016
    %1018 = vrot.lane.b32.xlu0 %v797, 56
    %v1019 = vpop.permute.xlu0 %1018
    %1020 = vrot.lane.b32.xlu0 %v798, 56
    %v1021 = vpop.permute.xlu0 %1020
    %1022 = vrot.lane.b32.xlu0 %v799, 56
    %v1023 = vpop.permute.xlu0 %1022
    %1040 = vrot.lane.b32.xlu0 %v800, 64
    %v1041 = vpop.permute.xlu0 %1040
    %1042 = vrot.lane.b32.xlu0 %v801, 64
    %v1043 = vpop.permute.xlu0 %1042
    %1044 = vrot.lane.b32.xlu0 %v802, 64
    %v1045 = vpop.permute.xlu0 %1044
    %1046 = vrot.lane.b32.xlu0 %v803, 64
    %v1047 = vpop.permute.xlu0 %1046
    %1048 = vrot.lane.b32.xlu0 %v804, 64
    %v1049 = vpop.permute.xlu0 %1048
    %1050 = vrot.lane.b32.xlu0 %v805, 64
    %v1051 = vpop.permute.xlu0 %1050
    %1052 = vrot.lane.b32.xlu0 %v806, 64
    %v1053 = vpop.permute.xlu0 %1052
    %1054 = vrot.lane.b32.xlu0 %v807, 64
    %v1055 = vpop.permute.xlu0 %1054
    %v1064 = vsel %vm64, %v735, %v817
    %v1065 = vsel %vm64, %v736, %v819
    %v1066 = vsel %vm64, %v737, %v821
    %v1067 = vsel %vm64, %v738, %v823
    %v1068 = vsel %vm64, %v739, %v825
    %v1069 = vsel %vm64, %v740, %v827
    %v1070 = vsel %vm64, %v741, %v829
    %v1071 = vsel %vm64, %v742, %v831
    %v1072 = vsel %vm560, %v1064, %v849
    %v1073 = vsel %vm560, %v1065, %v851
    %v1074 = vsel %vm560, %v1066, %v853
    %v1075 = vsel %vm560, %v1067, %v855
    %v1076 = vsel %vm560, %v1068, %v857
    %v1077 = vsel %vm560, %v1069, %v859
    %v1078 = vsel %vm560, %v1070, %v861
    %v1079 = vsel %vm560, %v1071, %v863
    %v1080 = vsel %vm578, %v1072, %v881
    %v1081 = vsel %vm578, %v1073, %v883
    %v1082 = vsel %vm578, %v1074, %v885
    %v1083 = vsel %vm578, %v1075, %v887
    %v1084 = vsel %vm578, %v1076, %v889
    %v1085 = vsel %vm578, %v1077, %v891
    %v1086 = vsel %vm578, %v1078, %v893
    %v1087 = vsel %vm578, %v1079, %v895
    %v1088 = vsel %vm596, %v1080, %v913
    %v1089 = vsel %vm596, %v1081, %v915
    %v1090 = vsel %vm596, %v1082, %v917
    %v1091 = vsel %vm596, %v1083, %v919
    %v1092 = vsel %vm596, %v1084, %v921
    %v1093 = vsel %vm596, %v1085, %v923
    %v1094 = vsel %vm596, %v1086, %v925
    %v1095 = vsel %vm596, %v1087, %v927
    %vm1096 = vcmask 326656
    %v1097 = vsel %vm1096, %v1088, %v945
    %v1098 = vsel %vm1096, %v1089, %v947
    %v1099 = vsel %vm1096, %v1090, %v949
    %v1100 = vsel %vm1096, %v1091, %v951
    %v1101 = vsel %vm1096, %v1092, %v953
    %v1102 = vsel %vm1096, %v1093, %v955
    %v1103 = vsel %vm1096, %v1094, %v957
    %v1104 = vsel %vm1096, %v1095, %v959
    %vm1105 = vcmask 392192
    %v1106 = vsel %vm1105, %v1097, %v977
    %v1107 = vsel %vm1105, %v1098, %v979
    %v1108 = vsel %vm1105, %v1099, %v981
    %v1109 = vsel %vm1105, %v1100, %v983
    %v1110 = vsel %vm1105, %v1101, %v985
    %v1111 = vsel %vm1105, %v1102, %v987
    %v1112 = vsel %vm1105, %v1103, %v989
    %v1113 = vsel %vm1105, %v1104, %v991
    %vm1114 = vcmask 457728
    %v1115 = vsel %vm1114, %v1106, %v1009
    %v1116 = vsel %vm1114, %v1107, %v1011
    %v1117 = vsel %vm1114, %v1108, %v1013
    %v1118 = vsel %vm1114, %v1109, %v1015
    %v1119 = vsel %vm1114, %v1110, %v1017
    %v1120 = vsel %vm1114, %v1111, %v1019
    %v1121 = vsel %vm1114, %v1112, %v1021
    %v1122 = vsel %vm1114, %v1113, %v1023
    %vm1123 = vcmask 523264
    %v1124 = vsel %vm1123, %v1115, %v1041
    %v1125 = vsel %vm1123, %v1116, %v1043
    %v1126 = vsel %vm1123, %v1117, %v1045
    %v1127 = vsel %vm1123, %v1118, %v1047
    %v1128 = vsel %vm1123, %v1119, %v1049
    %v1129 = vsel %vm1123, %v1120, %v1051
    %v1130 = vsel %vm1123, %v1121, %v1053
    %v1131 = vsel %vm1123, %v1122, %v1055
    %v1132 = vpack.c.bf16 %v1125, %v1124
    %v1133 = vpack.c.bf16 %v1127, %v1126
    %v1134 = vpack.c.bf16 %v1129, %v1128
    %v1135 = vpack.c.bf16 %v1131, %v1130
    %v1136 = vld [vmem:[%s3] sm:$0xf]
    %v1137 = vld [vmem:[%s3 + $0x4] sm:$0xf]
    %v1138 = vld [vmem:[%s3 + $0x8] sm:$0xf]
    %v1139 = vld [vmem:[%s3 + $0xc] sm:$0xf]
    %v1140 = vld [vmem:[%s3 + $0x10] sm:$0xf]
    %v1141 = vld [vmem:[%s3 + $0x14] sm:$0xf]
    %v1142 = vld [vmem:[%s3 + $0x18] sm:$0xf]
    %v1143 = vld [vmem:[%s3 + $0x1c] sm:$0xf]
    %v1144 = vld [vmem:[%s3 + $0x20] sm:$0xf]
    %v1145 = vld [vmem:[%s4] sm:$0x1]
    %v1147 = vlaneseq
    %v1148 = vshrl.u32 %v1147, 7
    %v1149 = vsub.s32 0, %v1148
    %v1150 = vrot.slane %v1145, %v1149
    %v1161 = vunpack.c.l.b16 %v1136
    %v1162 = vunpack.c.l.b16 %v1137
    %v1163 = vunpack.c.l.b16 %v1138
    %v1164 = vunpack.c.l.b16 %v1139
    %v1165 = vunpack.c.l.b16 %v1140
    %v1166 = vunpack.c.l.b16 %v1141
    %v1167 = vunpack.c.l.b16 %v1142
    %v1168 = vunpack.c.l.b16 %v1143
    %v1169 = vunpack.c.l.b16 %v1144
    %v1170 = vpack.c.b16 %v1162, %v1161
    %v1171 = vpack.c.b16 %v1164, %v1163
    %v1172 = vpack.c.b16 %v1166, %v1165
    %v1173 = vpack.c.b16 %v1168, %v1167
    %v1174 = vpack.c.b16 %v1169, %v1169
    %vm1179 = vcmask 588800
    %v1181 = vsel %vm1179, %v1132, 0
    %v1184 = vsel %vm1179, %v1133, 0
    %v1187 = vsel %vm1179, %v1134, 0
    %v1190 = vsel %vm1179, %v1135, 0
    %vm1192 = vcmask 1043456
    %v1194 = vsel %vm1192, %v1174, 0
    %1196 = vmatprep.subr.bf16.mxu0 0
    %1197 = vmatpush1.bf16.msra.mxu0 0
    %1198 = vmatprep.subr.bf16.mxu0 0
    %1199 = vmatpush1.bf16.msra.mxu0 0
    %1200 = vmatprep.subr.bf16.mxu0 0
    %1201 = vmatpush1.bf16.msra.mxu0 0
    %1202 = vmatprep.subr.bf16.mxu0 0
    %1203 = vmatpush1.bf16.msra.mxu0 %v1194
    %1204 = vmatprep.subr.bf16.mxu0 0
    %1205 = vmatpush1.bf16.msra.mxu0 %v1173
    %1206 = vmatprep.subr.bf16.mxu0 0
    %1207 = vmatpush1.bf16.msra.mxu0 %v1172
    %1208 = vmatprep.subr.bf16.mxu0 0
    %1209 = vmatpush1.bf16.msra.mxu0 %v1171
    %1210 = vmatprep.subr.bf16.mxu0 0
    %1211 = vmatpush1.bf16.msra.mxu0 %v1170
    %1212 = vmatprep.subr.bf16.mxu0 0
    %1213 = vmatpush2.bf16.msra.mxu0 0
    %1214 = vmatprep.subr.bf16.mxu0 0
    %1215 = vmatpush2.bf16.msra.mxu0 0
    %1216 = vmatprep.subr.bf16.mxu0 0
    %1217 = vmatpush2.bf16.msra.mxu0 0
    %1218 = vmatprep.subr.bf16.mxu0 0
    %1219 = vmatpush2.bf16.msra.mxu0 0
    %1220 = vmatprep.subr.bf16.mxu0 0
    %1221 = vmatpush2.bf16.msra.mxu0 0
    %1222 = vmatprep.subr.bf16.mxu0 0
    %1223 = vmatpush2.bf16.msra.mxu0 0
    %1224 = vmatprep.subr.bf16.mxu0 0
    %1225 = vmatpush2.bf16.msra.mxu0 0
    %1226 = vmatprep.subr.bf16.mxu0 0
    %1227 = vmatpush2.bf16.msra.mxu0 0
    %1228 = vmatprep.mubr.bf16.mxu0 0
    %1229 = vmatmul.mubr.bf16.gmra.mxu0 %v1181
    %v1230 = vpop.f32.mrf.mxu0
    %v1231 = vadd.f32 %v1150, %v1230
    %v1232 = vpop.f32.mrf.mxu0
    %v1233 = vpop.f32.mrf.mxu0
    %v1234 = vadd.f32 %v1150, %v1233
    %v1235 = vpop.f32.mrf.mxu0
    %1236 = vmatprep.mubr.bf16.mxu0 0
    %1237 = vmatmul.mubr.bf16.gmra.mxu0 %v1184
    %v1238 = vpop.f32.mrf.mxu0
    %v1239 = vadd.f32 %v1150, %v1238
    %v1240 = vpop.f32.mrf.mxu0
    %v1241 = vpop.f32.mrf.mxu0
    %v1242 = vadd.f32 %v1150, %v1241
    %v1243 = vpop.f32.mrf.mxu0
    %1244 = vmatprep.mubr.bf16.mxu0 0
    %1245 = vmatmul.mubr.bf16.gmra.mxu0 %v1187
    %v1246 = vpop.f32.mrf.mxu0
    %v1247 = vadd.f32 %v1150, %v1246
    %v1248 = vpop.f32.mrf.mxu0
    %v1249 = vpop.f32.mrf.mxu0
    %v1250 = vadd.f32 %v1150, %v1249
    %v1251 = vpop.f32.mrf.mxu0
    %1252 = vmatprep.mubr.bf16.mxu0 0
    %1253 = vmatmul.mubr.bf16.gmra.mxu0 %v1190
    %v1254 = vpop.f32.mrf.mxu0
    %v1255 = vadd.f32 %v1150, %v1254
    %v1256 = vpop.f32.mrf.mxu0
    %v1257 = vpop.f32.mrf.mxu0
    %v1258 = vadd.f32 %v1150, %v1257
    %v1259 = vpop.f32.mrf.mxu0
    %1260 = vdwg.mxu0
    %v1261 = vmax.f32 %v1231, 0.0
    %v1262 = vmax.f32 %v1234, 0.0
    %v1263 = vmax.f32 %v1239, 0.0
    %v1264 = vmax.f32 %v1242, 0.0
    %v1265 = vmax.f32 %v1247, 0.0
    %v1266 = vmax.f32 %v1250, 0.0
    %v1267 = vmax.f32 %v1255, 0.0
    %v1268 = vmax.f32 %v1258, 0.0
    %1269 = vst.msk [vmem:[#allocation7] sm:$0xff] %vm64, %v1261
    %1270 = vst.msk [vmem:[#allocation7 + $0x8] sm:$0xff] %vm64, %v1262
    %1271 = vst.msk [vmem:[#allocation7 + $0x10] sm:$0xff] %vm64, %v1263
    %1272 = vst.msk [vmem:[#allocation7 + $0x18] sm:$0xff] %vm64, %v1264
    %1273 = vst.msk [vmem:[#allocation7 + $0x20] sm:$0xff] %vm64, %v1265
    %1274 = vst.msk [vmem:[#allocation7 + $0x28] sm:$0xff] %vm64, %v1266
    %1275 = vst.msk [vmem:[#allocation7 + $0x30] sm:$0xff] %vm64, %v1267
    %1276 = vst.msk [vmem:[#allocation7 + $0x38] sm:$0xff] %vm64, %v1268
    %s1277 = scalar_lea.vmem [#allocation4], 128
    %v1278 = vld [vmem:[%s1277] sm:$0xff]
    %v1279 = vld [vmem:[%s1277 + $0x10] sm:$0xff]
    %v1280 = vld [vmem:[%s1277 + $0x20] sm:$0xff]
    %v1281 = vld [vmem:[%s1277 + $0x30] sm:$0xff]
    %v1282 = vld [vmem:[%s1277 + $0x40] sm:$0xff]
    %v1283 = vld [vmem:[%s1277 + $0x50] sm:$0xff]
    %v1284 = vld [vmem:[%s1277 + $0x60] sm:$0xff]
    %v1285 = vld [vmem:[%s1277 + $0x70] sm:$0xff]
    %s1286 = scalar_lea.vmem [#allocation4], 136
    %v1287 = vld [vmem:[%s1286] sm:$0xff]
    %v1288 = vld [vmem:[%s1286 + $0x10] sm:$0xff]
    %v1289 = vld [vmem:[%s1286 + $0x20] sm:$0xff]
    %v1290 = vld [vmem:[%s1286 + $0x30] sm:$0xff]
    %v1291 = vld [vmem:[%s1286 + $0x40] sm:$0xff]
    %v1292 = vld [vmem:[%s1286 + $0x50] sm:$0xff]
    %v1293 = vld [vmem:[%s1286 + $0x60] sm:$0xff]
    %v1294 = vld [vmem:[%s1286 + $0x70] sm:$0xff]
    %1303 = vrot.lane.b32.xlu0 %v1278, 124
    %v1304 = vpop.permute.xlu0 %1303
    %1305 = vrot.lane.b32.xlu0 %v1279, 124
    %v1306 = vpop.permute.xlu0 %1305
    %1307 = vrot.lane.b32.xlu0 %v1280, 124
    %v1308 = vpop.permute.xlu0 %1307
    %1309 = vrot.lane.b32.xlu0 %v1281, 124
    %v1310 = vpop.permute.xlu0 %1309
    %1311 = vrot.lane.b32.xlu0 %v1282, 124
    %v1312 = vpop.permute.xlu0 %1311
    %1313 = vrot.lane.b32.xlu0 %v1283, 124
    %v1314 = vpop.permute.xlu0 %1313
    %1315 = vrot.lane.b32.xlu0 %v1284, 124
    %v1316 = vpop.permute.xlu0 %1315
    %1317 = vrot.lane.b32.xlu0 %v1285, 124
    %v1318 = vpop.permute.xlu0 %1317
    %v1327 = vmax.f32 %v1278, %v1304
    %v1328 = vmax.f32 %v1279, %v1306
    %v1329 = vmax.f32 %v1280, %v1308
    %v1330 = vmax.f32 %v1281, %v1310
    %v1331 = vmax.f32 %v1282, %v1312
    %v1332 = vmax.f32 %v1283, %v1314
    %v1333 = vmax.f32 %v1284, %v1316
    %v1334 = vmax.f32 %v1285, %v1318
    %1343 = vrot.lane.b32.xlu0 %v1287, 124
    %v1344 = vpop.permute.xlu0 %1343
    %1345 = vrot.lane.b32.xlu0 %v1288, 124
    %v1346 = vpop.permute.xlu0 %1345
    %1347 = vrot.lane.b32.xlu0 %v1289, 124
    %v1348 = vpop.permute.xlu0 %1347
    %1349 = vrot.lane.b32.xlu0 %v1290, 124
    %v1350 = vpop.permute.xlu0 %1349
    %1351 = vrot.lane.b32.xlu0 %v1291, 124
    %v1352 = vpop.permute.xlu0 %1351
    %1353 = vrot.lane.b32.xlu0 %v1292, 124
    %v1354 = vpop.permute.xlu0 %1353
    %1355 = vrot.lane.b32.xlu0 %v1293, 124
    %v1356 = vpop.permute.xlu0 %1355
    %1357 = vrot.lane.b32.xlu0 %v1294, 124
    %v1358 = vpop.permute.xlu0 %1357
    %v1367 = vmax.f32 %v1287, %v1344
    %v1368 = vmax.f32 %v1288, %v1346
    %v1369 = vmax.f32 %v1289, %v1348
    %v1370 = vmax.f32 %v1290, %v1350
    %v1371 = vmax.f32 %v1291, %v1352
    %v1372 = vmax.f32 %v1292, %v1354
    %v1373 = vmax.f32 %v1293, %v1356
    %v1374 = vmax.f32 %v1294, %v1358
    %v1375 = vmax.f32 %v1327, %v1367
    %v1376 = vmax.f32 %v1328, %v1368
    %v1377 = vmax.f32 %v1329, %v1369
    %v1378 = vmax.f32 %v1330, %v1370
    %v1379 = vmax.f32 %v1331, %v1371
    %v1380 = vmax.f32 %v1332, %v1372
    %v1381 = vmax.f32 %v1333, %v1373
    %v1382 = vmax.f32 %v1334, %v1374
    %1383 = vst.msk [vmem:[%s197 + $0x1] sm:$0xff] %vm36, %v1375
    %1384 = vst.msk [vmem:[%s197 + $0x11] sm:$0xff] %vm36, %v1376
    %1385 = vst.msk [vmem:[%s197 + $0x21] sm:$0xff] %vm36, %v1377
    %1386 = vst.msk [vmem:[%s197 + $0x31] sm:$0xff] %vm36, %v1378
    %1387 = vst.msk [vmem:[%s197 + $0x41] sm:$0xff] %vm36, %v1379
    %1388 = vst.msk [vmem:[%s197 + $0x51] sm:$0xff] %vm36, %v1380
    %1389 = vst.msk [vmem:[%s197 + $0x61] sm:$0xff] %vm36, %v1381
    %1390 = vst.msk [vmem:[%s197 + $0x71] sm:$0xff] %vm36, %v1382
    %v1391 = vld [vmem:[#allocation2] sm:$0xff]
    %v1392 = vld [vmem:[#allocation2 + $0x10] sm:$0xff]
    %v1393 = vld [vmem:[#allocation2 + $0x20] sm:$0xff]
    %v1394 = vld [vmem:[#allocation2 + $0x30] sm:$0xff]
    %v1395 = vld [vmem:[#allocation2 + $0x40] sm:$0xff]
    %v1396 = vld [vmem:[#allocation2 + $0x50] sm:$0xff]
    %v1397 = vld [vmem:[#allocation2 + $0x60] sm:$0xff]
    %v1398 = vld [vmem:[#allocation2 + $0x70] sm:$0xff]
    %v1399 = vld [vmem:[#allocation2 + $0x1] sm:$0xff]
    %v1400 = vld [vmem:[#allocation2 + $0x11] sm:$0xff]
    %v1401 = vld [vmem:[#allocation2 + $0x21] sm:$0xff]
    %v1402 = vld [vmem:[#allocation2 + $0x31] sm:$0xff]
    %v1403 = vld [vmem:[#allocation2 + $0x41] sm:$0xff]
    %v1404 = vld [vmem:[#allocation2 + $0x51] sm:$0xff]
    %v1405 = vld [vmem:[#allocation2 + $0x61] sm:$0xff]
    %v1406 = vld [vmem:[#allocation2 + $0x71] sm:$0xff]
    %v1407 = vld [vmem:[#allocation2 + $0x2] sm:$0xff]
    %v1408 = vld [vmem:[#allocation2 + $0x12] sm:$0xff]
    %v1409 = vld [vmem:[#allocation2 + $0x22] sm:$0xff]
    %v1410 = vld [vmem:[#allocation2 + $0x32] sm:$0xff]
    %v1411 = vld [vmem:[#allocation2 + $0x42] sm:$0xff]
    %v1412 = vld [vmem:[#allocation2 + $0x52] sm:$0xff]
    %v1413 = vld [vmem:[#allocation2 + $0x62] sm:$0xff]
    %v1414 = vld [vmem:[#allocation2 + $0x72] sm:$0xff]
    %v1415 = vld [vmem:[%s197] sm:$0xff]
    %v1416 = vld [vmem:[%s197 + $0x10] sm:$0xff]
    %v1417 = vld [vmem:[%s197 + $0x20] sm:$0xff]
    %v1418 = vld [vmem:[%s197 + $0x30] sm:$0xff]
    %v1419 = vld [vmem:[%s197 + $0x40] sm:$0xff]
    %v1420 = vld [vmem:[%s197 + $0x50] sm:$0xff]
    %v1421 = vld [vmem:[%s197 + $0x60] sm:$0xff]
    %v1422 = vld [vmem:[%s197 + $0x70] sm:$0xff]
    %v1423 = vld [vmem:[%s197 + $0x1] sm:$0xff]
    %v1424 = vld [vmem:[%s197 + $0x11] sm:$0xff]
    %v1425 = vld [vmem:[%s197 + $0x21] sm:$0xff]
    %v1426 = vld [vmem:[%s197 + $0x31] sm:$0xff]
    %v1427 = vld [vmem:[%s197 + $0x41] sm:$0xff]
    %v1428 = vld [vmem:[%s197 + $0x51] sm:$0xff]
    %v1429 = vld [vmem:[%s197 + $0x61] sm:$0xff]
    %v1430 = vld [vmem:[%s197 + $0x71] sm:$0xff]
    %v1431 = vld [vmem:[%s197 + $0x2] sm:$0xff]
    %v1432 = vld [vmem:[%s197 + $0x12] sm:$0xff]
    %v1433 = vld [vmem:[%s197 + $0x22] sm:$0xff]
    %v1434 = vld [vmem:[%s197 + $0x32] sm:$0xff]
    %v1435 = vld [vmem:[%s197 + $0x42] sm:$0xff]
    %v1436 = vld [vmem:[%s197 + $0x52] sm:$0xff]
    %v1437 = vld [vmem:[%s197 + $0x62] sm:$0xff]
    %v1438 = vld [vmem:[%s197 + $0x72] sm:$0xff]
    %v1439 = vld [vmem:[%s254] sm:$0xff]
    %v1440 = vld [vmem:[%s254 + $0x10] sm:$0xff]
    %v1441 = vld [vmem:[%s254 + $0x20] sm:$0xff]
    %v1442 = vld [vmem:[%s254 + $0x30] sm:$0xff]
    %v1443 = vld [vmem:[%s254 + $0x40] sm:$0xff]
    %v1444 = vld [vmem:[%s254 + $0x50] sm:$0xff]
    %v1445 = vld [vmem:[%s254 + $0x60] sm:$0xff]
    %v1446 = vld [vmem:[%s254 + $0x70] sm:$0xff]
    %v1447 = vld [vmem:[%s254 + $0x1] sm:$0xff]
    %v1448 = vld [vmem:[%s254 + $0x11] sm:$0xff]
    %v1449 = vld [vmem:[%s254 + $0x21] sm:$0xff]
    %v1450 = vld [vmem:[%s254 + $0x31] sm:$0xff]
    %v1451 = vld [vmem:[%s254 + $0x41] sm:$0xff]
    %v1452 = vld [vmem:[%s254 + $0x51] sm:$0xff]
    %v1453 = vld [vmem:[%s254 + $0x61] sm:$0xff]
    %v1454 = vld [vmem:[%s254 + $0x71] sm:$0xff]
    %v1455 = vld [vmem:[%s254 + $0x2] sm:$0xff]
    %v1456 = vld [vmem:[%s254 + $0x12] sm:$0xff]
    %v1457 = vld [vmem:[%s254 + $0x22] sm:$0xff]
    %v1458 = vld [vmem:[%s254 + $0x32] sm:$0xff]
    %v1459 = vld [vmem:[%s254 + $0x42] sm:$0xff]
    %v1460 = vld [vmem:[%s254 + $0x52] sm:$0xff]
    %v1461 = vld [vmem:[%s254 + $0x62] sm:$0xff]
    %v1462 = vld [vmem:[%s254 + $0x72] sm:$0xff]
    %1471 = vrot.lane.b32.xlu0 %v1399, 4
    %v1472 = vpop.permute.xlu0 %1471
    %1473 = vrot.lane.b32.xlu0 %v1400, 4
    %v1474 = vpop.permute.xlu0 %1473
    %1475 = vrot.lane.b32.xlu0 %v1401, 4
    %v1476 = vpop.permute.xlu0 %1475
    %1477 = vrot.lane.b32.xlu0 %v1402, 4
    %v1478 = vpop.permute.xlu0 %1477
    %1479 = vrot.lane.b32.xlu0 %v1403, 4
    %v1480 = vpop.permute.xlu0 %1479
    %1481 = vrot.lane.b32.xlu0 %v1404, 4
    %v1482 = vpop.permute.xlu0 %1481
    %1483 = vrot.lane.b32.xlu0 %v1405, 4
    %v1484 = vpop.permute.xlu0 %1483
    %1485 = vrot.lane.b32.xlu0 %v1406, 4
    %v1486 = vpop.permute.xlu0 %1485
    %1503 = vrot.lane.b32.xlu0 %v1407, 8
    %v1504 = vpop.permute.xlu0 %1503
    %1505 = vrot.lane.b32.xlu0 %v1408, 8
    %v1506 = vpop.permute.xlu0 %1505
    %1507 = vrot.lane.b32.xlu0 %v1409, 8
    %v1508 = vpop.permute.xlu0 %1507
    %1509 = vrot.lane.b32.xlu0 %v1410, 8
    %v1510 = vpop.permute.xlu0 %1509
    %1511 = vrot.lane.b32.xlu0 %v1411, 8
    %v1512 = vpop.permute.xlu0 %1511
    %1513 = vrot.lane.b32.xlu0 %v1412, 8
    %v1514 = vpop.permute.xlu0 %1513
    %1515 = vrot.lane.b32.xlu0 %v1413, 8
    %v1516 = vpop.permute.xlu0 %1515
    %1517 = vrot.lane.b32.xlu0 %v1414, 8
    %v1518 = vpop.permute.xlu0 %1517
    %1535 = vrot.lane.b32.xlu0 %v1415, 12
    %v1536 = vpop.permute.xlu0 %1535
    %1537 = vrot.lane.b32.xlu0 %v1416, 12
    %v1538 = vpop.permute.xlu0 %1537
    %1539 = vrot.lane.b32.xlu0 %v1417, 12
    %v1540 = vpop.permute.xlu0 %1539
    %1541 = vrot.lane.b32.xlu0 %v1418, 12
    %v1542 = vpop.permute.xlu0 %1541
    %1543 = vrot.lane.b32.xlu0 %v1419, 12
    %v1544 = vpop.permute.xlu0 %1543
    %1545 = vrot.lane.b32.xlu0 %v1420, 12
    %v1546 = vpop.permute.xlu0 %1545
    %1547 = vrot.lane.b32.xlu0 %v1421, 12
    %v1548 = vpop.permute.xlu0 %1547
    %1549 = vrot.lane.b32.xlu0 %v1422, 12
    %v1550 = vpop.permute.xlu0 %1549
    %1567 = vrot.lane.b32.xlu0 %v1423, 16
    %v1568 = vpop.permute.xlu0 %1567
    %1569 = vrot.lane.b32.xlu0 %v1424, 16
    %v1570 = vpop.permute.xlu0 %1569
    %1571 = vrot.lane.b32.xlu0 %v1425, 16
    %v1572 = vpop.permute.xlu0 %1571
    %1573 = vrot.lane.b32.xlu0 %v1426, 16
    %v1574 = vpop.permute.xlu0 %1573
    %1575 = vrot.lane.b32.xlu0 %v1427, 16
    %v1576 = vpop.permute.xlu0 %1575
    %1577 = vrot.lane.b32.xlu0 %v1428, 16
    %v1578 = vpop.permute.xlu0 %1577
    %1579 = vrot.lane.b32.xlu0 %v1429, 16
    %v1580 = vpop.permute.xlu0 %1579
    %1581 = vrot.lane.b32.xlu0 %v1430, 16
    %v1582 = vpop.permute.xlu0 %1581
    %1599 = vrot.lane.b32.xlu0 %v1431, 20
    %v1600 = vpop.permute.xlu0 %1599
    %1601 = vrot.lane.b32.xlu0 %v1432, 20
    %v1602 = vpop.permute.xlu0 %1601
    %1603 = vrot.lane.b32.xlu0 %v1433, 20
    %v1604 = vpop.permute.xlu0 %1603
    %1605 = vrot.lane.b32.xlu0 %v1434, 20
    %v1606 = vpop.permute.xlu0 %1605
    %1607 = vrot.lane.b32.xlu0 %v1435, 20
    %v1608 = vpop.permute.xlu0 %1607
    %1609 = vrot.lane.b32.xlu0 %v1436, 20
    %v1610 = vpop.permute.xlu0 %1609
    %1611 = vrot.lane.b32.xlu0 %v1437, 20
    %v1612 = vpop.permute.xlu0 %1611
    %1613 = vrot.lane.b32.xlu0 %v1438, 20
    %v1614 = vpop.permute.xlu0 %1613
    %1631 = vrot.lane.b32.xlu0 %v1439, 24
    %v1632 = vpop.permute.xlu0 %1631
    %1633 = vrot.lane.b32.xlu0 %v1440, 24
    %v1634 = vpop.permute.xlu0 %1633
    %1635 = vrot.lane.b32.xlu0 %v1441, 24
    %v1636 = vpop.permute.xlu0 %1635
    %1637 = vrot.lane.b32.xlu0 %v1442, 24
    %v1638 = vpop.permute.xlu0 %1637
    %1639 = vrot.lane.b32.xlu0 %v1443, 24
    %v1640 = vpop.permute.xlu0 %1639
    %1641 = vrot.lane.b32.xlu0 %v1444, 24
    %v1642 = vpop.permute.xlu0 %1641
    %1643 = vrot.lane.b32.xlu0 %v1445, 24
    %v1644 = vpop.permute.xlu0 %1643
    %1645 = vrot.lane.b32.xlu0 %v1446, 24
    %v1646 = vpop.permute.xlu0 %1645
    %1663 = vrot.lane.b32.xlu0 %v1447, 28
    %v1664 = vpop.permute.xlu0 %1663
    %1665 = vrot.lane.b32.xlu0 %v1448, 28
    %v1666 = vpop.permute.xlu0 %1665
    %1667 = vrot.lane.b32.xlu0 %v1449, 28
    %v1668 = vpop.permute.xlu0 %1667
    %1669 = vrot.lane.b32.xlu0 %v1450, 28
    %v1670 = vpop.permute.xlu0 %1669
    %1671 = vrot.lane.b32.xlu0 %v1451, 28
    %v1672 = vpop.permute.xlu0 %1671
    %1673 = vrot.lane.b32.xlu0 %v1452, 28
    %v1674 = vpop.permute.xlu0 %1673
    %1675 = vrot.lane.b32.xlu0 %v1453, 28
    %v1676 = vpop.permute.xlu0 %1675
    %1677 = vrot.lane.b32.xlu0 %v1454, 28
    %v1678 = vpop.permute.xlu0 %1677
    %1695 = vrot.lane.b32.xlu0 %v1455, 32
    %v1696 = vpop.permute.xlu0 %1695
    %1697 = vrot.lane.b32.xlu0 %v1456, 32
    %v1698 = vpop.permute.xlu0 %1697
    %1699 = vrot.lane.b32.xlu0 %v1457, 32
    %v1700 = vpop.permute.xlu0 %1699
    %1701 = vrot.lane.b32.xlu0 %v1458, 32
    %v1702 = vpop.permute.xlu0 %1701
    %1703 = vrot.lane.b32.xlu0 %v1459, 32
    %v1704 = vpop.permute.xlu0 %1703
    %1705 = vrot.lane.b32.xlu0 %v1460, 32
    %v1706 = vpop.permute.xlu0 %1705
    %1707 = vrot.lane.b32.xlu0 %v1461, 32
    %v1708 = vpop.permute.xlu0 %1707
    %1709 = vrot.lane.b32.xlu0 %v1462, 32
    %v1710 = vpop.permute.xlu0 %1709
    %v1719 = vsel %vm36, %v1391, %v1472
    %v1720 = vsel %vm36, %v1392, %v1474
    %v1721 = vsel %vm36, %v1393, %v1476
    %v1722 = vsel %vm36, %v1394, %v1478
    %v1723 = vsel %vm36, %v1395, %v1480
    %v1724 = vsel %vm36, %v1396, %v1482
    %v1725 = vsel %vm36, %v1397, %v1484
    %v1726 = vsel %vm36, %v1398, %v1486
    %v1727 = vsel %vm64, %v1719, %v1504
    %v1728 = vsel %vm64, %v1720, %v1506
    %v1729 = vsel %vm64, %v1721, %v1508
    %v1730 = vsel %vm64, %v1722, %v1510
    %v1731 = vsel %vm64, %v1723, %v1512
    %v1732 = vsel %vm64, %v1724, %v1514
    %v1733 = vsel %vm64, %v1725, %v1516
    %v1734 = vsel %vm64, %v1726, %v1518
    %v1735 = vsel %vm551, %v1727, %v1536
    %v1736 = vsel %vm551, %v1728, %v1538
    %v1737 = vsel %vm551, %v1729, %v1540
    %v1738 = vsel %vm551, %v1730, %v1542
    %v1739 = vsel %vm551, %v1731, %v1544
    %v1740 = vsel %vm551, %v1732, %v1546
    %v1741 = vsel %vm551, %v1733, %v1548
    %v1742 = vsel %vm551, %v1734, %v1550
    %v1743 = vsel %vm560, %v1735, %v1568
    %v1744 = vsel %vm560, %v1736, %v1570
    %v1745 = vsel %vm560, %v1737, %v1572
    %v1746 = vsel %vm560, %v1738, %v1574
    %v1747 = vsel %vm560, %v1739, %v1576
    %v1748 = vsel %vm560, %v1740, %v1578
    %v1749 = vsel %vm560, %v1741, %v1580
    %v1750 = vsel %vm560, %v1742, %v1582
    %v1751 = vsel %vm569, %v1743, %v1600
    %v1752 = vsel %vm569, %v1744, %v1602
    %v1753 = vsel %vm569, %v1745, %v1604
    %v1754 = vsel %vm569, %v1746, %v1606
    %v1755 = vsel %vm569, %v1747, %v1608
    %v1756 = vsel %vm569, %v1748, %v1610
    %v1757 = vsel %vm569, %v1749, %v1612
    %v1758 = vsel %vm569, %v1750, %v1614
    %v1759 = vsel %vm578, %v1751, %v1632
    %v1760 = vsel %vm578, %v1752, %v1634
    %v1761 = vsel %vm578, %v1753, %v1636
    %v1762 = vsel %vm578, %v1754, %v1638
    %v1763 = vsel %vm578, %v1755, %v1640
    %v1764 = vsel %vm578, %v1756, %v1642
    %v1765 = vsel %vm578, %v1757, %v1644
    %v1766 = vsel %vm578, %v1758, %v1646
    %v1767 = vsel %vm587, %v1759, %v1664
    %v1768 = vsel %vm587, %v1760, %v1666
    %v1769 = vsel %vm587, %v1761, %v1668
    %v1770 = vsel %vm587, %v1762, %v1670
    %v1771 = vsel %vm587, %v1763, %v1672
    %v1772 = vsel %vm587, %v1764, %v1674
    %v1773 = vsel %vm587, %v1765, %v1676
    %v1774 = vsel %vm587, %v1766, %v1678
    %v1775 = vsel %vm596, %v1767, %v1696
    %v1776 = vsel %vm596, %v1768, %v1698
    %v1777 = vsel %vm596, %v1769, %v1700
    %v1778 = vsel %vm596, %v1770, %v1702
    %v1779 = vsel %vm596, %v1771, %v1704
    %v1780 = vsel %vm596, %v1772, %v1706
    %v1781 = vsel %vm596, %v1773, %v1708
    %v1782 = vsel %vm596, %v1774, %v1710
    %v1783 = vpack.c.bf16 %v1776, %v1775
    %v1784 = vpack.c.bf16 %v1778, %v1777
    %v1785 = vpack.c.bf16 %v1780, %v1779
    %v1786 = vpack.c.bf16 %v1782, %v1781
    %v1787 = vld [vmem:[%s1] sm:$0xf]
    %v1788 = vld [vmem:[%s1 + $0x4] sm:$0xf]
    %v1789 = vld [vmem:[%s1 + $0x8] sm:$0xf]
    %v1790 = vld [vmem:[%s1 + $0xc] sm:$0xf]
    %v1791 = vld [vmem:[%s1 + $0x10] sm:$0x3]
    %v1792 = vld [vmem:[%s2] sm:$0x1]
    %v1794 = vlaneseq
    %v1795 = vshrl.u32 %v1794, 7
    %v1796 = vsub.s32 0, %v1795
    %v1797 = vrot.slane %v1792, %v1796
    %v1804 = vunpack.c.l.b16 %v1787
    %v1805 = vunpack.c.l.b16 %v1788
    %v1806 = vunpack.c.l.b16 %v1789
    %v1807 = vunpack.c.l.b16 %v1790
    %v1808 = vunpack.c.l.b16 %v1791
    %v1809 = vpack.c.b16 %v1805, %v1804
    %v1810 = vpack.c.b16 %v1807, %v1806
    %v1811 = vpack.c.b16 %v1808, %v1808
    %v1815 = vsel %vm636, %v1783, 0
    %v1818 = vsel %vm636, %v1784, 0
    %v1821 = vsel %vm636, %v1785, 0
    %v1824 = vsel %vm636, %v1786, 0
    %v1827 = vsel %vm649, %v1811, 0
    %1829 = vmatprep.subr.bf16.mxu0 0
    %1830 = vmatpush1.bf16.msra.mxu0 0
    %1831 = vmatprep.subr.bf16.mxu0 0
    %1832 = vmatpush1.bf16.msra.mxu0 0
    %1833 = vmatprep.subr.bf16.mxu0 0
    %1834 = vmatpush1.bf16.msra.mxu0 0
    %1835 = vmatprep.subr.bf16.mxu0 0
    %1836 = vmatpush1.bf16.msra.mxu0 0
    %1837 = vmatprep.subr.bf16.mxu0 0
    %1838 = vmatpush1.bf16.msra.mxu0 0
    %1839 = vmatprep.subr.bf16.mxu0 0
    %1840 = vmatpush1.bf16.msra.mxu0 %v1827
    %1841 = vmatprep.subr.bf16.mxu0 0
    %1842 = vmatpush1.bf16.msra.mxu0 %v1810
    %1843 = vmatprep.subr.bf16.mxu0 0
    %1844 = vmatpush1.bf16.msra.mxu0 %v1809
    %1845 = vmatprep.subr.bf16.mxu0 0
    %1846 = vmatpush2.bf16.msra.mxu0 0
    %1847 = vmatprep.subr.bf16.mxu0 0
    %1848 = vmatpush2.bf16.msra.mxu0 0
    %1849 = vmatprep.subr.bf16.mxu0 0
    %1850 = vmatpush2.bf16.msra.mxu0 0
    %1851 = vmatprep.subr.bf16.mxu0 0
    %1852 = vmatpush2.bf16.msra.mxu0 0
    %1853 = vmatprep.subr.bf16.mxu0 0
    %1854 = vmatpush2.bf16.msra.mxu0 0
    %1855 = vmatprep.subr.bf16.mxu0 0
    %1856 = vmatpush2.bf16.msra.mxu0 0
    %1857 = vmatprep.subr.bf16.mxu0 0
    %1858 = vmatpush2.bf16.msra.mxu0 0
    %1859 = vmatprep.subr.bf16.mxu0 0
    %1860 = vmatpush2.bf16.msra.mxu0 0
    %1861 = vmatprep.mubr.bf16.mxu0 0
    %1862 = vmatmul.mubr.bf16.gmra.mxu0 %v1815
    %v1863 = vpop.f32.mrf.mxu0
    %v1864 = vadd.f32 %v1797, %v1863
    %v1865 = vpop.f32.mrf.mxu0
    %v1866 = vpop.f32.mrf.mxu0
    %v1867 = vadd.f32 %v1797, %v1866
    %v1868 = vpop.f32.mrf.mxu0
    %1869 = vmatprep.mubr.bf16.mxu0 0
    %1870 = vmatmul.mubr.bf16.gmra.mxu0 %v1818
    %v1871 = vpop.f32.mrf.mxu0
    %v1872 = vadd.f32 %v1797, %v1871
    %v1873 = vpop.f32.mrf.mxu0
    %v1874 = vpop.f32.mrf.mxu0
    %v1875 = vadd.f32 %v1797, %v1874
    %v1876 = vpop.f32.mrf.mxu0
    %1877 = vmatprep.mubr.bf16.mxu0 0
    %1878 = vmatmul.mubr.bf16.gmra.mxu0 %v1821
    %v1879 = vpop.f32.mrf.mxu0
    %v1880 = vadd.f32 %v1797, %v1879
    %v1881 = vpop.f32.mrf.mxu0
    %v1882 = vpop.f32.mrf.mxu0
    %v1883 = vadd.f32 %v1797, %v1882
    %v1884 = vpop.f32.mrf.mxu0
    %1885 = vmatprep.mubr.bf16.mxu0 0
    %1886 = vmatmul.mubr.bf16.gmra.mxu0 %v1824
    %v1887 = vpop.f32.mrf.mxu0
    %v1888 = vadd.f32 %v1797, %v1887
    %v1889 = vpop.f32.mrf.mxu0
    %v1890 = vpop.f32.mrf.mxu0
    %v1891 = vadd.f32 %v1797, %v1890
    %v1892 = vpop.f32.mrf.mxu0
    %1893 = vdwg.mxu0
    %v1894 = vmax.f32 %v1864, 0.0
    %v1895 = vmax.f32 %v1867, 0.0
    %v1896 = vmax.f32 %v1872, 0.0
    %v1897 = vmax.f32 %v1875, 0.0
    %v1898 = vmax.f32 %v1880, 0.0
    %v1899 = vmax.f32 %v1883, 0.0
    %v1900 = vmax.f32 %v1888, 0.0
    %v1901 = vmax.f32 %v1891, 0.0
    %1902 = vst.msk [vmem:[%s726 + $0x1] sm:$0xff] %vm64, %v1894
    %1903 = vst.msk [vmem:[%s726 + $0x11] sm:$0xff] %vm64, %v1895
    %1904 = vst.msk [vmem:[%s726 + $0x21] sm:$0xff] %vm64, %v1896
    %1905 = vst.msk [vmem:[%s726 + $0x31] sm:$0xff] %vm64, %v1897
    %1906 = vst.msk [vmem:[%s726 + $0x41] sm:$0xff] %vm64, %v1898
    %1907 = vst.msk [vmem:[%s726 + $0x51] sm:$0xff] %vm64, %v1899
    %1908 = vst.msk [vmem:[%s726 + $0x61] sm:$0xff] %vm64, %v1900
    %1909 = vst.msk [vmem:[%s726 + $0x71] sm:$0xff] %vm64, %v1901
    %v1910 = vld [vmem:[#allocation3] sm:$0xff]
    %v1911 = vld [vmem:[#allocation3 + $0x10] sm:$0xff]
    %v1912 = vld [vmem:[#allocation3 + $0x20] sm:$0xff]
    %v1913 = vld [vmem:[#allocation3 + $0x30] sm:$0xff]
    %v1914 = vld [vmem:[#allocation3 + $0x40] sm:$0xff]
    %v1915 = vld [vmem:[#allocation3 + $0x50] sm:$0xff]
    %v1916 = vld [vmem:[#allocation3 + $0x60] sm:$0xff]
    %v1917 = vld [vmem:[#allocation3 + $0x70] sm:$0xff]
    %v1918 = vld [vmem:[#allocation3 + $0x1] sm:$0xff]
    %v1919 = vld [vmem:[#allocation3 + $0x11] sm:$0xff]
    %v1920 = vld [vmem:[#allocation3 + $0x21] sm:$0xff]
    %v1921 = vld [vmem:[#allocation3 + $0x31] sm:$0xff]
    %v1922 = vld [vmem:[#allocation3 + $0x41] sm:$0xff]
    %v1923 = vld [vmem:[#allocation3 + $0x51] sm:$0xff]
    %v1924 = vld [vmem:[#allocation3 + $0x61] sm:$0xff]
    %v1925 = vld [vmem:[#allocation3 + $0x71] sm:$0xff]
    %v1926 = vld [vmem:[#allocation3 + $0x2] sm:$0xff]
    %v1927 = vld [vmem:[#allocation3 + $0x12] sm:$0xff]
    %v1928 = vld [vmem:[#allocation3 + $0x22] sm:$0xff]
    %v1929 = vld [vmem:[#allocation3 + $0x32] sm:$0xff]
    %v1930 = vld [vmem:[#allocation3 + $0x42] sm:$0xff]
    %v1931 = vld [vmem:[#allocation3 + $0x52] sm:$0xff]
    %v1932 = vld [vmem:[#allocation3 + $0x62] sm:$0xff]
    %v1933 = vld [vmem:[#allocation3 + $0x72] sm:$0xff]
    %v1934 = vld [vmem:[%s726] sm:$0xff]
    %v1935 = vld [vmem:[%s726 + $0x10] sm:$0xff]
    %v1936 = vld [vmem:[%s726 + $0x20] sm:$0xff]
    %v1937 = vld [vmem:[%s726 + $0x30] sm:$0xff]
    %v1938 = vld [vmem:[%s726 + $0x40] sm:$0xff]
    %v1939 = vld [vmem:[%s726 + $0x50] sm:$0xff]
    %v1940 = vld [vmem:[%s726 + $0x60] sm:$0xff]
    %v1941 = vld [vmem:[%s726 + $0x70] sm:$0xff]
    %v1942 = vld [vmem:[%s726 + $0x1] sm:$0xff]
    %v1943 = vld [vmem:[%s726 + $0x11] sm:$0xff]
    %v1944 = vld [vmem:[%s726 + $0x21] sm:$0xff]
    %v1945 = vld [vmem:[%s726 + $0x31] sm:$0xff]
    %v1946 = vld [vmem:[%s726 + $0x41] sm:$0xff]
    %v1947 = vld [vmem:[%s726 + $0x51] sm:$0xff]
    %v1948 = vld [vmem:[%s726 + $0x61] sm:$0xff]
    %v1949 = vld [vmem:[%s726 + $0x71] sm:$0xff]
    %v1950 = vld [vmem:[%s726 + $0x2] sm:$0xff]
    %v1951 = vld [vmem:[%s726 + $0x12] sm:$0xff]
    %v1952 = vld [vmem:[%s726 + $0x22] sm:$0xff]
    %v1953 = vld [vmem:[%s726 + $0x32] sm:$0xff]
    %v1954 = vld [vmem:[%s726 + $0x42] sm:$0xff]
    %v1955 = vld [vmem:[%s726 + $0x52] sm:$0xff]
    %v1956 = vld [vmem:[%s726 + $0x62] sm:$0xff]
    %v1957 = vld [vmem:[%s726 + $0x72] sm:$0xff]
    %v1958 = vld [vmem:[%s783] sm:$0xff]
    %v1959 = vld [vmem:[%s783 + $0x10] sm:$0xff]
    %v1960 = vld [vmem:[%s783 + $0x20] sm:$0xff]
    %v1961 = vld [vmem:[%s783 + $0x30] sm:$0xff]
    %v1962 = vld [vmem:[%s783 + $0x40] sm:$0xff]
    %v1963 = vld [vmem:[%s783 + $0x50] sm:$0xff]
    %v1964 = vld [vmem:[%s783 + $0x60] sm:$0xff]
    %v1965 = vld [vmem:[%s783 + $0x70] sm:$0xff]
    %v1966 = vld [vmem:[%s783 + $0x1] sm:$0xff]
    %v1967 = vld [vmem:[%s783 + $0x11] sm:$0xff]
    %v1968 = vld [vmem:[%s783 + $0x21] sm:$0xff]
    %v1969 = vld [vmem:[%s783 + $0x31] sm:$0xff]
    %v1970 = vld [vmem:[%s783 + $0x41] sm:$0xff]
    %v1971 = vld [vmem:[%s783 + $0x51] sm:$0xff]
    %v1972 = vld [vmem:[%s783 + $0x61] sm:$0xff]
    %v1973 = vld [vmem:[%s783 + $0x71] sm:$0xff]
    %v1974 = vld [vmem:[%s783 + $0x2] sm:$0xff]
    %v1975 = vld [vmem:[%s783 + $0x12] sm:$0xff]
    %v1976 = vld [vmem:[%s783 + $0x22] sm:$0xff]
    %v1977 = vld [vmem:[%s783 + $0x32] sm:$0xff]
    %v1978 = vld [vmem:[%s783 + $0x42] sm:$0xff]
    %v1979 = vld [vmem:[%s783 + $0x52] sm:$0xff]
    %v1980 = vld [vmem:[%s783 + $0x62] sm:$0xff]
    %v1981 = vld [vmem:[%s783 + $0x72] sm:$0xff]
    %1990 = vrot.lane.b32.xlu0 %v1918, 8
    %v1991 = vpop.permute.xlu0 %1990
    %1992 = vrot.lane.b32.xlu0 %v1919, 8
    %v1993 = vpop.permute.xlu0 %1992
    %1994 = vrot.lane.b32.xlu0 %v1920, 8
    %v1995 = vpop.permute.xlu0 %1994
    %1996 = vrot.lane.b32.xlu0 %v1921, 8
    %v1997 = vpop.permute.xlu0 %1996
    %1998 = vrot.lane.b32.xlu0 %v1922, 8
    %v1999 = vpop.permute.xlu0 %1998
    %2000 = vrot.lane.b32.xlu0 %v1923, 8
    %v2001 = vpop.permute.xlu0 %2000
    %2002 = vrot.lane.b32.xlu0 %v1924, 8
    %v2003 = vpop.permute.xlu0 %2002
    %2004 = vrot.lane.b32.xlu0 %v1925, 8
    %v2005 = vpop.permute.xlu0 %2004
    %2022 = vrot.lane.b32.xlu0 %v1926, 16
    %v2023 = vpop.permute.xlu0 %2022
    %2024 = vrot.lane.b32.xlu0 %v1927, 16
    %v2025 = vpop.permute.xlu0 %2024
    %2026 = vrot.lane.b32.xlu0 %v1928, 16
    %v2027 = vpop.permute.xlu0 %2026
    %2028 = vrot.lane.b32.xlu0 %v1929, 16
    %v2029 = vpop.permute.xlu0 %2028
    %2030 = vrot.lane.b32.xlu0 %v1930, 16
    %v2031 = vpop.permute.xlu0 %2030
    %2032 = vrot.lane.b32.xlu0 %v1931, 16
    %v2033 = vpop.permute.xlu0 %2032
    %2034 = vrot.lane.b32.xlu0 %v1932, 16
    %v2035 = vpop.permute.xlu0 %2034
    %2036 = vrot.lane.b32.xlu0 %v1933, 16
    %v2037 = vpop.permute.xlu0 %2036
    %2054 = vrot.lane.b32.xlu0 %v1934, 24
    %v2055 = vpop.permute.xlu0 %2054
    %2056 = vrot.lane.b32.xlu0 %v1935, 24
    %v2057 = vpop.permute.xlu0 %2056
    %2058 = vrot.lane.b32.xlu0 %v1936, 24
    %v2059 = vpop.permute.xlu0 %2058
    %2060 = vrot.lane.b32.xlu0 %v1937, 24
    %v2061 = vpop.permute.xlu0 %2060
    %2062 = vrot.lane.b32.xlu0 %v1938, 24
    %v2063 = vpop.permute.xlu0 %2062
    %2064 = vrot.lane.b32.xlu0 %v1939, 24
    %v2065 = vpop.permute.xlu0 %2064
    %2066 = vrot.lane.b32.xlu0 %v1940, 24
    %v2067 = vpop.permute.xlu0 %2066
    %2068 = vrot.lane.b32.xlu0 %v1941, 24
    %v2069 = vpop.permute.xlu0 %2068
    %2086 = vrot.lane.b32.xlu0 %v1942, 32
    %v2087 = vpop.permute.xlu0 %2086
    %2088 = vrot.lane.b32.xlu0 %v1943, 32
    %v2089 = vpop.permute.xlu0 %2088
    %2090 = vrot.lane.b32.xlu0 %v1944, 32
    %v2091 = vpop.permute.xlu0 %2090
    %2092 = vrot.lane.b32.xlu0 %v1945, 32
    %v2093 = vpop.permute.xlu0 %2092
    %2094 = vrot.lane.b32.xlu0 %v1946, 32
    %v2095 = vpop.permute.xlu0 %2094
    %2096 = vrot.lane.b32.xlu0 %v1947, 32
    %v2097 = vpop.permute.xlu0 %2096
    %2098 = vrot.lane.b32.xlu0 %v1948, 32
    %v2099 = vpop.permute.xlu0 %2098
    %2100 = vrot.lane.b32.xlu0 %v1949, 32
    %v2101 = vpop.permute.xlu0 %2100
    %2118 = vrot.lane.b32.xlu0 %v1950, 40
    %v2119 = vpop.permute.xlu0 %2118
    %2120 = vrot.lane.b32.xlu0 %v1951, 40
    %v2121 = vpop.permute.xlu0 %2120
    %2122 = vrot.lane.b32.xlu0 %v1952, 40
    %v2123 = vpop.permute.xlu0 %2122
    %2124 = vrot.lane.b32.xlu0 %v1953, 40
    %v2125 = vpop.permute.xlu0 %2124
    %2126 = vrot.lane.b32.xlu0 %v1954, 40
    %v2127 = vpop.permute.xlu0 %2126
    %2128 = vrot.lane.b32.xlu0 %v1955, 40
    %v2129 = vpop.permute.xlu0 %2128
    %2130 = vrot.lane.b32.xlu0 %v1956, 40
    %v2131 = vpop.permute.xlu0 %2130
    %2132 = vrot.lane.b32.xlu0 %v1957, 40
    %v2133 = vpop.permute.xlu0 %2132
    %2150 = vrot.lane.b32.xlu0 %v1958, 48
    %v2151 = vpop.permute.xlu0 %2150
    %2152 = vrot.lane.b32.xlu0 %v1959, 48
    %v2153 = vpop.permute.xlu0 %2152
    %2154 = vrot.lane.b32.xlu0 %v1960, 48
    %v2155 = vpop.permute.xlu0 %2154
    %2156 = vrot.lane.b32.xlu0 %v1961, 48
    %v2157 = vpop.permute.xlu0 %2156
    %2158 = vrot.lane.b32.xlu0 %v1962, 48
    %v2159 = vpop.permute.xlu0 %2158
    %2160 = vrot.lane.b32.xlu0 %v1963, 48
    %v2161 = vpop.permute.xlu0 %2160
    %2162 = vrot.lane.b32.xlu0 %v1964, 48
    %v2163 = vpop.permute.xlu0 %2162
    %2164 = vrot.lane.b32.xlu0 %v1965, 48
    %v2165 = vpop.permute.xlu0 %2164
    %2182 = vrot.lane.b32.xlu0 %v1966, 56
    %v2183 = vpop.permute.xlu0 %2182
    %2184 = vrot.lane.b32.xlu0 %v1967, 56
    %v2185 = vpop.permute.xlu0 %2184
    %2186 = vrot.lane.b32.xlu0 %v1968, 56
    %v2187 = vpop.permute.xlu0 %2186
    %2188 = vrot.lane.b32.xlu0 %v1969, 56
    %v2189 = vpop.permute.xlu0 %2188
    %2190 = vrot.lane.b32.xlu0 %v1970, 56
    %v2191 = vpop.permute.xlu0 %2190
    %2192 = vrot.lane.b32.xlu0 %v1971, 56
    %v2193 = vpop.permute.xlu0 %2192
    %2194 = vrot.lane.b32.xlu0 %v1972, 56
    %v2195 = vpop.permute.xlu0 %2194
    %2196 = vrot.lane.b32.xlu0 %v1973, 56
    %v2197 = vpop.permute.xlu0 %2196
    %2214 = vrot.lane.b32.xlu0 %v1974, 64
    %v2215 = vpop.permute.xlu0 %2214
    %2216 = vrot.lane.b32.xlu0 %v1975, 64
    %v2217 = vpop.permute.xlu0 %2216
    %2218 = vrot.lane.b32.xlu0 %v1976, 64
    %v2219 = vpop.permute.xlu0 %2218
    %2220 = vrot.lane.b32.xlu0 %v1977, 64
    %v2221 = vpop.permute.xlu0 %2220
    %2222 = vrot.lane.b32.xlu0 %v1978, 64
    %v2223 = vpop.permute.xlu0 %2222
    %2224 = vrot.lane.b32.xlu0 %v1979, 64
    %v2225 = vpop.permute.xlu0 %2224
    %2226 = vrot.lane.b32.xlu0 %v1980, 64
    %v2227 = vpop.permute.xlu0 %2226
    %2228 = vrot.lane.b32.xlu0 %v1981, 64
    %v2229 = vpop.permute.xlu0 %2228
    %v2238 = vsel %vm64, %v1910, %v1991
    %v2239 = vsel %vm64, %v1911, %v1993
    %v2240 = vsel %vm64, %v1912, %v1995
    %v2241 = vsel %vm64, %v1913, %v1997
    %v2242 = vsel %vm64, %v1914, %v1999
    %v2243 = vsel %vm64, %v1915, %v2001
    %v2244 = vsel %vm64, %v1916, %v2003
    %v2245 = vsel %vm64, %v1917, %v2005
    %v2246 = vsel %vm560, %v2238, %v2023
    %v2247 = vsel %vm560, %v2239, %v2025
    %v2248 = vsel %vm560, %v2240, %v2027
    %v2249 = vsel %vm560, %v2241, %v2029
    %v2250 = vsel %vm560, %v2242, %v2031
    %v2251 = vsel %vm560, %v2243, %v2033
    %v2252 = vsel %vm560, %v2244, %v2035
    %v2253 = vsel %vm560, %v2245, %v2037
    %v2254 = vsel %vm578, %v2246, %v2055
    %v2255 = vsel %vm578, %v2247, %v2057
    %v2256 = vsel %vm578, %v2248, %v2059
    %v2257 = vsel %vm578, %v2249, %v2061
    %v2258 = vsel %vm578, %v2250, %v2063
    %v2259 = vsel %vm578, %v2251, %v2065
    %v2260 = vsel %vm578, %v2252, %v2067
    %v2261 = vsel %vm578, %v2253, %v2069
    %v2262 = vsel %vm596, %v2254, %v2087
    %v2263 = vsel %vm596, %v2255, %v2089
    %v2264 = vsel %vm596, %v2256, %v2091
    %v2265 = vsel %vm596, %v2257, %v2093
    %v2266 = vsel %vm596, %v2258, %v2095
    %v2267 = vsel %vm596, %v2259, %v2097
    %v2268 = vsel %vm596, %v2260, %v2099
    %v2269 = vsel %vm596, %v2261, %v2101
    %v2270 = vsel %vm1096, %v2262, %v2119
    %v2271 = vsel %vm1096, %v2263, %v2121
    %v2272 = vsel %vm1096, %v2264, %v2123
    %v2273 = vsel %vm1096, %v2265, %v2125
    %v2274 = vsel %vm1096, %v2266, %v2127
    %v2275 = vsel %vm1096, %v2267, %v2129
    %v2276 = vsel %vm1096, %v2268, %v2131
    %v2277 = vsel %vm1096, %v2269, %v2133
    %v2278 = vsel %vm1105, %v2270, %v2151
    %v2279 = vsel %vm1105, %v2271, %v2153
    %v2280 = vsel %vm1105, %v2272, %v2155
    %v2281 = vsel %vm1105, %v2273, %v2157
    %v2282 = vsel %vm1105, %v2274, %v2159
    %v2283 = vsel %vm1105, %v2275, %v2161
    %v2284 = vsel %vm1105, %v2276, %v2163
    %v2285 = vsel %vm1105, %v2277, %v2165
    %v2286 = vsel %vm1114, %v2278, %v2183
    %v2287 = vsel %vm1114, %v2279, %v2185
    %v2288 = vsel %vm1114, %v2280, %v2187
    %v2289 = vsel %vm1114, %v2281, %v2189
    %v2290 = vsel %vm1114, %v2282, %v2191
    %v2291 = vsel %vm1114, %v2283, %v2193
    %v2292 = vsel %vm1114, %v2284, %v2195
    %v2293 = vsel %vm1114, %v2285, %v2197
    %v2294 = vsel %vm1123, %v2286, %v2215
    %v2295 = vsel %vm1123, %v2287, %v2217
    %v2296 = vsel %vm1123, %v2288, %v2219
    %v2297 = vsel %vm1123, %v2289, %v2221
    %v2298 = vsel %vm1123, %v2290, %v2223
    %v2299 = vsel %vm1123, %v2291, %v2225
    %v2300 = vsel %vm1123, %v2292, %v2227
    %v2301 = vsel %vm1123, %v2293, %v2229
    %v2302 = vpack.c.bf16 %v2295, %v2294
    %v2303 = vpack.c.bf16 %v2297, %v2296
    %v2304 = vpack.c.bf16 %v2299, %v2298
    %v2305 = vpack.c.bf16 %v2301, %v2300
    %v2306 = vld [vmem:[%s3] sm:$0xf]
    %v2307 = vld [vmem:[%s3 + $0x4] sm:$0xf]
    %v2308 = vld [vmem:[%s3 + $0x8] sm:$0xf]
    %v2309 = vld [vmem:[%s3 + $0xc] sm:$0xf]
    %v2310 = vld [vmem:[%s3 + $0x10] sm:$0xf]
    %v2311 = vld [vmem:[%s3 + $0x14] sm:$0xf]
    %v2312 = vld [vmem:[%s3 + $0x18] sm:$0xf]
    %v2313 = vld [vmem:[%s3 + $0x1c] sm:$0xf]
    %v2314 = vld [vmem:[%s3 + $0x20] sm:$0xf]
    %v2315 = vld [vmem:[%s4] sm:$0x1]
    %v2317 = vlaneseq
    %v2318 = vshrl.u32 %v2317, 7
    %v2319 = vsub.s32 0, %v2318
    %v2320 = vrot.slane %v2315, %v2319
    %v2331 = vunpack.c.l.b16 %v2306
    %v2332 = vunpack.c.l.b16 %v2307
    %v2333 = vunpack.c.l.b16 %v2308
    %v2334 = vunpack.c.l.b16 %v2309
    %v2335 = vunpack.c.l.b16 %v2310
    %v2336 = vunpack.c.l.b16 %v2311
    %v2337 = vunpack.c.l.b16 %v2312
    %v2338 = vunpack.c.l.b16 %v2313
    %v2339 = vunpack.c.l.b16 %v2314
    %v2340 = vpack.c.b16 %v2332, %v2331
    %v2341 = vpack.c.b16 %v2334, %v2333
    %v2342 = vpack.c.b16 %v2336, %v2335
    %v2343 = vpack.c.b16 %v2338, %v2337
    %v2344 = vpack.c.b16 %v2339, %v2339
    %v2350 = vsel %vm1179, %v2302, 0
    %v2353 = vsel %vm1179, %v2303, 0
    %v2356 = vsel %vm1179, %v2304, 0
    %v2359 = vsel %vm1179, %v2305, 0
    %v2362 = vsel %vm1192, %v2344, 0
    %2364 = vmatprep.subr.bf16.mxu0 0
    %2365 = vmatpush1.bf16.msra.mxu0 0
    %2366 = vmatprep.subr.bf16.mxu0 0
    %2367 = vmatpush1.bf16.msra.mxu0 0
    %2368 = vmatprep.subr.bf16.mxu0 0
    %2369 = vmatpush1.bf16.msra.mxu0 0
    %2370 = vmatprep.subr.bf16.mxu0 0
    %2371 = vmatpush1.bf16.msra.mxu0 %v2362
    %2372 = vmatprep.subr.bf16.mxu0 0
    %2373 = vmatpush1.bf16.msra.mxu0 %v2343
    %2374 = vmatprep.subr.bf16.mxu0 0
    %2375 = vmatpush1.bf16.msra.mxu0 %v2342
    %2376 = vmatprep.subr.bf16.mxu0 0
    %2377 = vmatpush1.bf16.msra.mxu0 %v2341
    %2378 = vmatprep.subr.bf16.mxu0 0
    %2379 = vmatpush1.bf16.msra.mxu0 %v2340
    %2380 = vmatprep.subr.bf16.mxu0 0
    %2381 = vmatpush2.bf16.msra.mxu0 0
    %2382 = vmatprep.subr.bf16.mxu0 0
    %2383 = vmatpush2.bf16.msra.mxu0 0
    %2384 = vmatprep.subr.bf16.mxu0 0
    %2385 = vmatpush2.bf16.msra.mxu0 0
    %2386 = vmatprep.subr.bf16.mxu0 0
    %2387 = vmatpush2.bf16.msra.mxu0 0
    %2388 = vmatprep.subr.bf16.mxu0 0
    %2389 = vmatpush2.bf16.msra.mxu0 0
    %2390 = vmatprep.subr.bf16.mxu0 0
    %2391 = vmatpush2.bf16.msra.mxu0 0
    %2392 = vmatprep.subr.bf16.mxu0 0
    %2393 = vmatpush2.bf16.msra.mxu0 0
    %2394 = vmatprep.subr.bf16.mxu0 0
    %2395 = vmatpush2.bf16.msra.mxu0 0
    %2396 = vmatprep.mubr.bf16.mxu0 0
    %2397 = vmatmul.mubr.bf16.gmra.mxu0 %v2350
    %v2398 = vpop.f32.mrf.mxu0
    %v2399 = vadd.f32 %v2320, %v2398
    %v2400 = vpop.f32.mrf.mxu0
    %v2401 = vpop.f32.mrf.mxu0
    %v2402 = vadd.f32 %v2320, %v2401
    %v2403 = vpop.f32.mrf.mxu0
    %2404 = vmatprep.mubr.bf16.mxu0 0
    %2405 = vmatmul.mubr.bf16.gmra.mxu0 %v2353
    %v2406 = vpop.f32.mrf.mxu0
    %v2407 = vadd.f32 %v2320, %v2406
    %v2408 = vpop.f32.mrf.mxu0
    %v2409 = vpop.f32.mrf.mxu0
    %v2410 = vadd.f32 %v2320, %v2409
    %v2411 = vpop.f32.mrf.mxu0
    %2412 = vmatprep.mubr.bf16.mxu0 0
    %2413 = vmatmul.mubr.bf16.gmra.mxu0 %v2356
    %v2414 = vpop.f32.mrf.mxu0
    %v2415 = vadd.f32 %v2320, %v2414
    %v2416 = vpop.f32.mrf.mxu0
    %v2417 = vpop.f32.mrf.mxu0
    %v2418 = vadd.f32 %v2320, %v2417
    %v2419 = vpop.f32.mrf.mxu0
    %2420 = vmatprep.mubr.bf16.mxu0 0
    %2421 = vmatmul.mubr.bf16.gmra.mxu0 %v2359
    %v2422 = vpop.f32.mrf.mxu0
    %v2423 = vadd.f32 %v2320, %v2422
    %v2424 = vpop.f32.mrf.mxu0
    %v2425 = vpop.f32.mrf.mxu0
    %v2426 = vadd.f32 %v2320, %v2425
    %v2427 = vpop.f32.mrf.mxu0
    %2428 = vdwg.mxu0
    %v2429 = vmax.f32 %v2399, 0.0
    %v2430 = vmax.f32 %v2402, 0.0
    %v2431 = vmax.f32 %v2407, 0.0
    %v2432 = vmax.f32 %v2410, 0.0
    %v2433 = vmax.f32 %v2415, 0.0
    %v2434 = vmax.f32 %v2418, 0.0
    %v2435 = vmax.f32 %v2423, 0.0
    %v2436 = vmax.f32 %v2426, 0.0
    %s2437 = scalar_lea.vmem [#allocation7], 64
    %2438 = vst.msk [vmem:[%s2437] sm:$0xff] %vm64, %v2429
    %2439 = vst.msk [vmem:[%s2437 + $0x8] sm:$0xff] %vm64, %v2430
    %2440 = vst.msk [vmem:[%s2437 + $0x10] sm:$0xff] %vm64, %v2431
    %2441 = vst.msk [vmem:[%s2437 + $0x18] sm:$0xff] %vm64, %v2432
    %2442 = vst.msk [vmem:[%s2437 + $0x20] sm:$0xff] %vm64, %v2433
    %2443 = vst.msk [vmem:[%s2437 + $0x28] sm:$0xff] %vm64, %v2434
    %2444 = vst.msk [vmem:[%s2437 + $0x30] sm:$0xff] %vm64, %v2435
    %2445 = vst.msk [vmem:[%s2437 + $0x38] sm:$0xff] %vm64, %v2436
    // Predicated region
    $region26: #{tpu_custom_call.1} parent=1 // pred_check
      _
    $region27: #{tpu_custom_call.1} parent=1 // pred_check_branch
      %2447 = sbr.rel (0) target = $region29
    $region28: #{tpu_custom_call.1} parent=1 // pred_region
      %s2449 = ssub.s32 2048, 2048
      %2450 = vsyncadd [#allocation6], %s2449
      %s2451 = sshll.u32 [#allocation7], 4
      %s2452 = int_to_ptr.vmem [resolvable:$true] %s2451
      %2457 = dma.vmem_to_hbm [thread:$0]  %s2452, 2048, %s5, [#allocation6], 128, 128, 8
    $region29: #{tpu_custom_call.1} parent=1 // pred_fallthru
      _
    // Predicated region
    $region30: #{tpu_custom_call.1} parent=1 // pred_check
      _
    $region31: #{tpu_custom_call.1} parent=1 // pred_check_branch
      %2459 = sbr.rel (0) target = $region33
    $region32: #{tpu_custom_call.1} parent=1 // pred_region
      %2460 = dma.done [#allocation6], 2048
    $region33: #{tpu_custom_call.1} parent=1 // pred_fallthru
      _
    %2461 = vsyncpa [#allocation5], 1
    %2462 = vsyncpa [#allocation6], 1

</llo_original>
